<compile_context>
chip_gen: v5e
topology: v5e:2x2
jax: 0.10.0
libtpu: 0.0.40
codegen_flags: <defaults>
</compile_context>

<pallas_src>
import functools

import jax
import jax.numpy as jnp
from jax import lax
from jax.experimental import pallas as pl
from jax.experimental.pallas import tpu as pltpu

_VMEM_LIMIT = 48 * 1024 * 1024  # fits v5e/v6e (128 MiB phys) and v7x (64 MiB phys)


# ----------------------------------------------------------------------------------
# In-kernel building blocks (2-D values: rows = positions/sublanes, cols = channels).
# Everything is matmuls + elementwise ops -> robust Mosaic lowering, no scratch refs.
# ----------------------------------------------------------------------------------
def _zero_pad_rows(x, p):
    """Zero-pad p rows on both ends: (L, C) -> (L+2p, C), via a 0/1 gather matmul."""
    l = x.shape[0]
    lp = l + 2 * p
    r = lax.broadcasted_iota(jnp.int32, (lp, l), 0)
    c = lax.broadcasted_iota(jnp.int32, (lp, l), 1)
    g = (r == c + p).astype(jnp.float32)
    return jnp.dot(g, x.astype(jnp.float32), preferred_element_type=jnp.float32)


def _subsample_rows(y, stride):
    """Pick rows 0, stride, 2*stride, ... of y (Lf, C) via a 0/1 selection matmul."""
    lf = y.shape[0]
    lout = (lf - 1) // stride + 1
    r = lax.broadcasted_iota(jnp.int32, (lout, lf), 0)
    c = lax.broadcasted_iota(jnp.int32, (lout, lf), 1)
    sel = (c == r * stride).astype(jnp.float32)
    return jnp.dot(sel, y.astype(jnp.float32), preferred_element_type=jnp.float32)


def _conv_bn_relu(x, w_ref, b_ref, *, k, stride=1, padding=0, relu=True):
    """1-D conv (cross-correlation) + folded-BN bias + ReLU for a single example.

    x: (Lin, Cin) value; w_ref: (k, Cin, Cout) bf16 ref (BN scale pre-folded);
    b_ref: (1, Cout) f32 ref.  Returns (Lout, Cout) f32.
    """
    if padding > 0:
        x = _zero_pad_rows(x, padding)
    xb = x.astype(jnp.bfloat16)
    lp = xb.shape[0]
    lfull = lp - k + 1
    acc = None
    for j in range(k):
        xj = xb if k == 1 else xb[j:j + lfull, :]
        t = jnp.dot(xj, w_ref[j], preferred_element_type=jnp.float32)
        acc = t if acc is None else acc + t
    if stride > 1:
        acc = _subsample_rows(acc, stride)
    y = acc + b_ref[...]
    if relu:
        y = jnp.maximum(y, 0.0)
    return y


def _maxpool_3s2(x):
    """MaxPool1d(kernel=3, stride=2, pad=0): (L, C) -> ((L-3)//2+1, C) f32 (exact)."""
    l = x.shape[0]
    lf = l - 2
    xf = x.astype(jnp.float32)
    m = jnp.maximum(jnp.maximum(xf[0:lf, :], xf[1:1 + lf, :]), xf[2:2 + lf, :])
    return _subsample_rows(m, 2)


def _avgpool_3s1p1(x):
    """AvgPool1d(3, stride=1, pad=1, count_include_pad=False): (L, C) -> (L, C) f32."""
    l = x.shape[0]
    xf = x.astype(jnp.float32)
    r = lax.broadcasted_iota(jnp.int32, (l, l), 0)
    c = lax.broadcasted_iota(jnp.int32, (l, l), 1)
    band = (((r - c) <= 1) & ((c - r) <= 1)).astype(jnp.float32)
    s = jnp.dot(band, xf, preferred_element_type=jnp.float32)
    cnt = jnp.sum(band, axis=1, keepdims=True)  # 3 in the middle, 2 (or 1) at borders
    return s / cnt


# ----------------------------------------------------------------------------------
# Per-block fused kernels (one pallas_call per block, grid over the batch).
# Each grid step reads the full (L, Cin) example and writes the full concatenated
# (Lout, Cout_total) block output.
# ----------------------------------------------------------------------------------
def _stem_kernel(x_ref, w1, b1, w2, b2, w3, b3, o_ref):
    x = x_ref[0]                                             # (95, 2)
    y = _conv_bn_relu(x, w1, b1, k=3, stride=2)              # (47, 32)
    y = _conv_bn_relu(y, w2, b2, k=3)                        # (45, 32)
    y = _conv_bn_relu(y, w3, b3, k=3, padding=1)             # (45, 64)
    o_ref[0] = y.astype(o_ref.dtype)


def _mixed3a_kernel(x_ref, wc, bc, o_ref):
    x = x_ref[0]                                             # (45, 64)
    o_ref[0, :, 0:64] = _maxpool_3s2(x).astype(o_ref.dtype)
    o_ref[0, :, 64:160] = _conv_bn_relu(x, wc, bc, k=3, stride=2).astype(o_ref.dtype)


def _mixed4a_kernel(x_ref, wm, bm, w0b, b0b, w1b, b1b, w1c, b1c, w1d, b1d, o_ref):
    x = x_ref[0]                                             # (22, 160)
    m = _conv_bn_relu(x, wm, bm, k=1)                        # (22, 128): [0:64]=b0, [64:128]=b1
    y0 = _conv_bn_relu(m[:, 0:64], w0b, b0b, k=3)            # (20, 96)
    o_ref[0, :, 0:96] = y0.astype(o_ref.dtype)
    y1 = _conv_bn_relu(m[:, 64:128], w1b, b1b, k=7, padding=3)
    y1 = _conv_bn_relu(y1, w1c, b1c, k=7, padding=3)
    y1 = _conv_bn_relu(y1, w1d, b1d, k=3)                    # (20, 96)
    o_ref[0, :, 96:192] = y1.astype(o_ref.dtype)


def _mixed5a_kernel(x_ref, wc, bc, o_ref):
    x = x_ref[0]                                             # (20, 192)
    o_ref[0, :, 0:192] = _conv_bn_relu(x, wc, bc, k=3, stride=2).astype(o_ref.dtype)
    o_ref[0, :, 192:384] = _maxpool_3s2(x).astype(o_ref.dtype)


def _inception_a_kernel(x_ref, wm, bm, w1b, b1b, w2b, b2b, w2c, b2c, w3, b3, o_ref):
    x = x_ref[0]                                             # (9, 384)
    m = _conv_bn_relu(x, wm, bm, k=1)                        # (9, 224): 96 | 64 | 64
    o_ref[0, :, 0:96] = m[:, 0:96].astype(o_ref.dtype)       # branch0
    y1 = _conv_bn_relu(m[:, 96:160], w1b, b1b, k=3, padding=1)
    o_ref[0, :, 96:192] = y1.astype(o_ref.dtype)             # branch1
    y2 = _conv_bn_relu(m[:, 160:224], w2b, b2b, k=3, padding=1)
    y2 = _conv_bn_relu(y2, w2c, b2c, k=3, padding=1)
    o_ref[0, :, 192:288] = y2.astype(o_ref.dtype)            # branch2
    y3 = _conv_bn_relu(_avgpool_3s1p1(x), w3, b3, k=1)
    o_ref[0, :, 288:384] = y3.astype(o_ref.dtype)            # branch3


def _reduction_a_kernel(x_ref, w0, b0, w1a, b1a, w1b, b1b, w1c, b1c, o_ref):
    x = x_ref[0]                                             # (9, 384)
    o_ref[0, :, 0:384] = _conv_bn_relu(x, w0, b0, k=3, stride=2).astype(o_ref.dtype)
    y1 = _conv_bn_relu(x, w1a, b1a, k=1)                     # 384 -> 192
    y1 = _conv_bn_relu(y1, w1b, b1b, k=3, padding=1)         # 192 -> 224
    y1 = _conv_bn_relu(y1, w1c, b1c, k=3, stride=2)          # 224 -> 256, L=4
    o_ref[0, :, 384:640] = y1.astype(o_ref.dtype)
    o_ref[0, :, 640:1024] = _maxpool_3s2(x).astype(o_ref.dtype)


def _inception_b_kernel(x_ref, wm, bm, w1b, b1b, w1c, b1c,
                        w2b, b2b, w2c, b2c, w2d, b2d, w2e, b2e, w3, b3, o_ref):
    x = x_ref[0]                                             # (4, 1024)
    m = _conv_bn_relu(x, wm, bm, k=1)                        # (4, 768): 384 | 192 | 192
    o_ref[0, :, 0:384] = m[:, 0:384].astype(o_ref.dtype)     # branch0
    y1 = _conv_bn_relu(m[:, 384:576], w1b, b1b, k=7, padding=3)
    y1 = _conv_bn_relu(y1, w1c, b1c, k=7, padding=3)
    o_ref[0, :, 384:640] = y1.astype(o_ref.dtype)            # branch1 (256)
    y2 = _conv_bn_relu(m[:, 576:768], w2b, b2b, k=7, padding=3)
    y2 = _conv_bn_relu(y2, w2c, b2c, k=7, padding=3)
    y2 = _conv_bn_relu(y2, w2d, b2d, k=7, padding=3)
    y2 = _conv_bn_relu(y2, w2e, b2e, k=7, padding=3)
    o_ref[0, :, 640:896] = y2.astype(o_ref.dtype)            # branch2 (256)
    y3 = _conv_bn_relu(_avgpool_3s1p1(x), w3, b3, k=1)
    o_ref[0, :, 896:1024] = y3.astype(o_ref.dtype)           # branch3 (128)


def _reduction_b_kernel(x_ref, wm, bm, w0b, b0b, w1b, b1b, w1c, b1c, w1d, b1d, o_ref):
    x = x_ref[0]                                             # (4, 1024)
    m = _conv_bn_relu(x, wm, bm, k=1)                        # (4, 448): 192 | 256
    y0 = _conv_bn_relu(m[:, 0:192], w0b, b0b, k=3, stride=2)          # (1, 192)
    o_ref[0, :, 0:192] = y0.astype(o_ref.dtype)
    y1 = _conv_bn_relu(m[:, 192:448], w1b, b1b, k=7, padding=3)
    y1 = _conv_bn_relu(y1, w1c, b1c, k=7, padding=3)
    y1 = _conv_bn_relu(y1, w1d, b1d, k=3, stride=2)                    # (1, 320)
    o_ref[0, :, 192:512] = y1.astype(o_ref.dtype)
    o_ref[0, :, 512:1536] = _maxpool_3s2(x).astype(o_ref.dtype)        # (1, 1024)


def _inception_c_kernel(x_ref, wm, bm, w1b, b1b, w2b, b2b, w2c, b2c, w2d, b2d, w3, b3, o_ref):
    x = x_ref[0]                                             # (1, 1536)
    m = _conv_bn_relu(x, wm, bm, k=1)                        # (1, 1024): 256 | 384 | 384
    o_ref[0, :, 0:256] = m[:, 0:256].astype(o_ref.dtype)     # branch0
    y1 = _conv_bn_relu(m[:, 256:640], w1b, b1b, k=3, padding=1)   # 384 -> 512 (1a|1b merged)
    o_ref[0, :, 256:768] = y1.astype(o_ref.dtype)
    y2 = _conv_bn_relu(m[:, 640:1024], w2b, b2b, k=3, padding=1)  # 384 -> 448
    y2 = _conv_bn_relu(y2, w2c, b2c, k=3, padding=1)              # 448 -> 512
    y2 = _conv_bn_relu(y2, w2d, b2d, k=3, padding=1)              # 512 -> 512 (3a|3b merged)
    o_ref[0, :, 768:1280] = y2.astype(o_ref.dtype)
    y3 = _conv_bn_relu(_avgpool_3s1p1(x), w3, b3, k=1)
    o_ref[0, :, 1280:1536] = y3.astype(o_ref.dtype)          # branch3


def _head_kernel(x_ref, w_ref, b_ref, o_ref):
    x = x_ref[0].astype(jnp.float32)                         # (L, 1536)
    feat = jnp.sum(x, axis=0, keepdims=True) * (1.0 / x.shape[0])   # adaptive avg pool
    y = jnp.dot(feat.astype(jnp.bfloat16), w_ref[...],
                preferred_element_type=jnp.float32) + b_ref[...]
    o_ref[0] = y


# ----------------------------------------------------------------------------------
# pallas_call wrappers
# ----------------------------------------------------------------------------------
@functools.partial(jax.jit, static_argnames=("kernel_fn", "lout", "cout"))
def _run_block(x, params, *, kernel_fn, lout, cout):
    n, l, cin = x.shape
    in_specs = [pl.BlockSpec((1, l, cin), lambda i: (i, 0, 0))]
    for p in params:
        in_specs.append(pl.BlockSpec(p.shape, lambda i, nd=p.ndim: (0,) * nd))
    return pl.pallas_call(
        kernel_fn,
        grid=(n,),
        in_specs=in_specs,
        out_specs=pl.BlockSpec((1, lout, cout), lambda i: (i, 0, 0)),
        out_shape=jax.ShapeDtypeStruct((n, lout, cout), jnp.bfloat16),
        compiler_params=pltpu.CompilerParams(
            dimension_semantics=("parallel",),
            vmem_limit_bytes=_VMEM_LIMIT),
    )(x, *params)


@jax.jit
def _head(x, w, b):
    n, l, c = x.shape
    nc = w.shape[1]
    out = pl.pallas_call(
        _head_kernel,
        grid=(n,),
        in_specs=[pl.BlockSpec((1, l, c), lambda i: (i, 0, 0)),
                  pl.BlockSpec((c, nc), lambda i: (0, 0)),
                  pl.BlockSpec((1, nc), lambda i: (0, 0))],
        out_specs=pl.BlockSpec((1, 1, nc), lambda i: (i, 0, 0)),
        out_shape=jax.ShapeDtypeStruct((n, 1, nc), jnp.float32),
        compiler_params=pltpu.CompilerParams(
            dimension_semantics=("parallel",),
            vmem_limit_bytes=_VMEM_LIMIT),
    )(x, w, b)
    return out.reshape(n, nc)


# ----------------------------------------------------------------------------------
# Parameters (synthetic, deterministic).  BN (inference) is folded: scale -> weights,
# shift -> per-channel bias.  Weights are stored bf16 as (k, Cin, Cout).
# ----------------------------------------------------------------------------------
class KeyGen:
    def __init__(self, key):
        self.key = key

    def __call__(self):
        self.key, sub = jax.random.split(self.key)
        return sub


def _conv_params(kg, cin, cout, k, stride=1, padding=0):
    w = jax.random.normal(kg(), (cout, cin, k), jnp.float32) * (2.0 / (cin * k)) ** 0.5
    gamma = 1.0 + 0.1 * jax.random.normal(kg(), (cout,), jnp.float32)
    beta = 0.05 * jax.random.normal(kg(), (cout,), jnp.float32)
    rmean = 0.05 * jax.random.normal(kg(), (cout,), jnp.float32)
    rvar = 1.0 + 0.1 * jax.random.uniform(kg(), (cout,), jnp.float32)
    scale = gamma / jnp.sqrt(rvar + 1e-3)
    wf = w * scale[:, None, None]                                   # fold BN scale
    wk = jnp.transpose(wf, (2, 1, 0)).astype(jnp.bfloat16)          # (k, cin, cout)
    bias = (beta - rmean * scale).reshape(1, cout).astype(jnp.float32)
    return {"w": wk, "b": bias}


def _merge(convs):
    """Fuse convs that share the same input & geometry along Cout (exact)."""
    return {"w": jnp.concatenate([c["w"] for c in convs], axis=-1),
            "b": jnp.concatenate([c["b"] for c in convs], axis=-1)}


def _flat(*convs):
    out = []
    for c in convs:
        out.append(c["w"])
        out.append(c["b"])
    return tuple(out)


def _out_len(l, k, stride=1, padding=0):
    return (l + 2 * padding - k) // stride + 1


# ----------------------------------------------------------------------------------
# Blocks
# ----------------------------------------------------------------------------------
class Stem:
    def __init__(self, kg):
        self.c1 = _conv_params(kg, 2, 32, 3, 2)
        self.c2 = _conv_params(kg, 32, 32, 3, 1)
        self.c3 = _conv_params(kg, 32, 64, 3, 1, 1)

    def __call__(self, x):
        lo = _out_len(_out_len(_out_len(x.shape[1], 3, 2), 3), 3, 1, 1)
        return _run_block(x, _flat(self.c1, self.c2, self.c3),
                          kernel_fn=_stem_kernel, lout=lo, cout=64)


class Mixed3a:
    def __init__(self, kg):
        self.conv = _conv_params(kg, 64, 96, 3, 2)

    def __call__(self, x):
        lo = _out_len(x.shape[1], 3, 2)
        return _run_block(x, _flat(self.conv), kernel_fn=_mixed3a_kernel, lout=lo, cout=160)


class Mixed4a:
    def __init__(self, kg):
        b0_0 = _conv_params(kg, 160, 64, 1, 1)
        self.b0_1 = _conv_params(kg, 64, 96, 3, 1)
        b1_0 = _conv_params(kg, 160, 64, 1, 1)
        self.b1_1 = _conv_params(kg, 64, 64, 7, 1, 3)
        self.b1_2 = _conv_params(kg, 64, 64, 7, 1, 3)
        self.b1_3 = _conv_params(kg, 64, 96, 3, 1)
        self.merged = _merge([b0_0, b1_0])

    def __call__(self, x):
        lo = _out_len(x.shape[1], 3, 1)
        return _run_block(x, _flat(self.merged, self.b0_1, self.b1_1, self.b1_2, self.b1_3),
                          kernel_fn=_mixed4a_kernel, lout=lo, cout=192)


class Mixed5a:
    def __init__(self, kg):
        self.conv = _conv_params(kg, 192, 192, 3, 2)

    def __call__(self, x):
        lo = _out_len(x.shape[1], 3, 2)
        return _run_block(x, _flat(self.conv), kernel_fn=_mixed5a_kernel, lout=lo, cout=384)


class InceptionA:
    def __init__(self, kg):
        b0 = _conv_params(kg, 384, 96, 1, 1)
        b1_0 = _conv_params(kg, 384, 64, 1, 1)
        self.b1_1 = _conv_params(kg, 64, 96, 3, 1, 1)
        b2_0 = _conv_params(kg, 384, 64, 1, 1)
        self.b2_1 = _conv_params(kg, 64, 96, 3, 1, 1)
        self.b2_2 = _conv_params(kg, 96, 96, 3, 1, 1)
        self.b3 = _conv_params(kg, 384, 96, 1, 1)
        self.merged = _merge([b0, b1_0, b2_0])

    def __call__(self, x):
        return _run_block(x, _flat(self.merged, self.b1_1, self.b2_1, self.b2_2, self.b3),
                          kernel_fn=_inception_a_kernel, lout=x.shape[1], cout=384)


class ReductionA:
    def __init__(self, kg):
        self.b0 = _conv_params(kg, 384, 384, 3, 2)
        self.b1_0 = _conv_params(kg, 384, 192, 1, 1)
        self.b1_1 = _conv_params(kg, 192, 224, 3, 1, 1)
        self.b1_2 = _conv_params(kg, 224, 256, 3, 2)

    def __call__(self, x):
        lo = _out_len(x.shape[1], 3, 2)
        return _run_block(x, _flat(self.b0, self.b1_0, self.b1_1, self.b1_2),
                          kernel_fn=_reduction_a_kernel, lout=lo, cout=1024)


class InceptionB:
    def __init__(self, kg):
        b0 = _conv_params(kg, 1024, 384, 1, 1)
        b1_0 = _conv_params(kg, 1024, 192, 1, 1)
        self.b1_1 = _conv_params(kg, 192, 224, 7, 1, 3)
        self.b1_2 = _conv_params(kg, 224, 256, 7, 1, 3)
        b2_0 = _conv_params(kg, 1024, 192, 1, 1)
        self.b2_1 = _conv_params(kg, 192, 192, 7, 1, 3)
        self.b2_2 = _conv_params(kg, 192, 224, 7, 1, 3)
        self.b2_3 = _conv_params(kg, 224, 224, 7, 1, 3)
        self.b2_4 = _conv_params(kg, 224, 256, 7, 1, 3)
        self.b3 = _conv_params(kg, 1024, 128, 1, 1)
        self.merged = _merge([b0, b1_0, b2_0])

    def __call__(self, x):
        return _run_block(x, _flat(self.merged, self.b1_1, self.b1_2,
                                   self.b2_1, self.b2_2, self.b2_3, self.b2_4, self.b3),
                          kernel_fn=_inception_b_kernel, lout=x.shape[1], cout=1024)


class ReductionB:
    def __init__(self, kg):
        b0_0 = _conv_params(kg, 1024, 192, 1, 1)
        self.b0_1 = _conv_params(kg, 192, 192, 3, 2)
        b1_0 = _conv_params(kg, 1024, 256, 1, 1)
        self.b1_1 = _conv_params(kg, 256, 256, 7, 1, 3)
        self.b1_2 = _conv_params(kg, 256, 320, 7, 1, 3)
        self.b1_3 = _conv_params(kg, 320, 320, 3, 2)
        self.merged = _merge([b0_0, b1_0])

    def __call__(self, x):
        lo = _out_len(x.shape[1], 3, 2)
        return _run_block(x, _flat(self.merged, self.b0_1, self.b1_1, self.b1_2, self.b1_3),
                          kernel_fn=_reduction_b_kernel, lout=lo, cout=1536)


class InceptionC:
    def __init__(self, kg):
        b0 = _conv_params(kg, 1536, 256, 1, 1)
        b1_0 = _conv_params(kg, 1536, 384, 1, 1)
        b1_1a = _conv_params(kg, 384, 256, 3, 1, 1)
        b1_1b = _conv_params(kg, 384, 256, 3, 1, 1)
        b2_0 = _conv_params(kg, 1536, 384, 1, 1)
        self.b2_1 = _conv_params(kg, 384, 448, 3, 1, 1)
        self.b2_2 = _conv_params(kg, 448, 512, 3, 1, 1)
        b2_3a = _conv_params(kg, 512, 256, 3, 1, 1)
        b2_3b = _conv_params(kg, 512, 256, 3, 1, 1)
        self.b3 = _conv_params(kg, 1536, 256, 1, 1)
        self.merged = _merge([b0, b1_0, b2_0])
        self.b1_m = _merge([b1_1a, b1_1b])
        self.b2_3m = _merge([b2_3a, b2_3b])

    def __call__(self, x):
        return _run_block(x, _flat(self.merged, self.b1_m, self.b2_1, self.b2_2,
                                   self.b2_3m, self.b3),
                          kernel_fn=_inception_c_kernel, lout=x.shape[1], cout=1536)


class InceptionV4:
    def __init__(self, kg, num_classes=1001):
        blocks = [Stem(kg), Mixed3a(kg), Mixed4a(kg), Mixed5a(kg)]
        blocks += [InceptionA(kg) for _ in range(4)]
        blocks += [ReductionA(kg)]
        blocks += [InceptionB(kg) for _ in range(7)]
        blocks += [ReductionB(kg)]
        blocks += [InceptionC(kg) for _ in range(3)]
        self.blocks = blocks
        w = jax.random.normal(kg(), (num_classes, 1536), jnp.float32) * (1.0 / 1536.0) ** 0.5
        self.lin_w = jnp.transpose(w, (1, 0)).astype(jnp.bfloat16)          # (1536, classes)
        self.lin_b = (0.01 * jax.random.normal(kg(), (num_classes,), jnp.float32)).reshape(1, -1)

    def __call__(self, x_ncw):
        x = jnp.transpose(x_ncw, (0, 2, 1)).astype(jnp.bfloat16)            # NCW -> (N, L, C)
        for blk in self.blocks:
            x = blk(x)
        return _head(x, self.lin_w, self.lin_b)


# ----------------------------------------------------------------------------------
if __name__ == "__main__":
    key = jax.random.PRNGKey(0)
    k_in, k_params = jax.random.split(key)

    # Smallest length that survives all stride-2 stages: L=95 -> final feature len 1.
    x = jax.random.normal(k_in, (2, 2, 95), jnp.float32)   # PyTorch-style (N, C=2, W)

    model = InceptionV4(KeyGen(k_params), num_classes=1001)
    out = model(x)
    out = jax.block_until_ready(out)

    assert out.shape == (2, 1001), out.shape
    assert bool(jnp.all(jnp.isfinite(out)))
    print("KERNEL_OK")
</pallas_src>

<mosaic_0001>
module attributes {stable_mosaic.version = 11 : i64} {
  func.func @_stem_kernel(%arg0: i32, %arg1: memref<1x95x2xbf16, #tpu.memory_space<vmem>>, %arg2: memref<3x2x32xbf16, #tpu.memory_space<vmem>>, %arg3: memref<1x32xf32, #tpu.memory_space<vmem>>, %arg4: memref<3x32x32xbf16, #tpu.memory_space<vmem>>, %arg5: memref<1x32xf32, #tpu.memory_space<vmem>>, %arg6: memref<3x32x64xbf16, #tpu.memory_space<vmem>>, %arg7: memref<1x64xf32, #tpu.memory_space<vmem>>, %arg8: memref<1x45x64xbf16, #tpu.memory_space<vmem>>) attributes {dimension_semantics = [#tpu.dimension_semantics<parallel>], iteration_bounds = array<i64: 2>, scalar_prefetch = 0 : i64, scratch_operands = 0 : i64, tpu.core_type = #tpu.core_type<tc>, window_params = [{transform_indices = @transform_0, window_bounds = array<i64: 1, 95, 2>}, {pipeline_mode = #tpu.pipeline_mode<synchronous>, transform_indices = @transform_1, window_bounds = array<i64: 3, 2, 32>}, {pipeline_mode = #tpu.pipeline_mode<synchronous>, transform_indices = @transform_2, window_bounds = array<i64: 1, 32>}, {pipeline_mode = #tpu.pipeline_mode<synchronous>, transform_indices = @transform_3, window_bounds = array<i64: 3, 32, 32>}, {pipeline_mode = #tpu.pipeline_mode<synchronous>, transform_indices = @transform_4, window_bounds = array<i64: 1, 32>}, {pipeline_mode = #tpu.pipeline_mode<synchronous>, transform_indices = @transform_5, window_bounds = array<i64: 3, 32, 64>}, {pipeline_mode = #tpu.pipeline_mode<synchronous>, transform_indices = @transform_6, window_bounds = array<i64: 1, 64>}, {transform_indices = @transform_7, window_bounds = array<i64: 1, 45, 64>}]} {
    %c0 = arith.constant 0 : index
    %c0_0 = arith.constant 0 : index
    %c0_1 = arith.constant 0 : index
    %0 = vector.load %arg1[%c0, %c0_0, %c0_1] : memref<1x95x2xbf16, #tpu.memory_space<vmem>>, vector<1x95x2xbf16>
    %1 = vector.shape_cast %0 : vector<1x95x2xbf16> to vector<95x2xbf16>
    %2 = vector.extract_strided_slice %1 {offsets = [0, 0], sizes = [93, 2], strides = [1, 1]} : vector<95x2xbf16> to vector<93x2xbf16>
    %c0_2 = arith.constant 0 : index
    %c0_3 = arith.constant 0 : index
    %c0_4 = arith.constant 0 : index
    %3 = vector.load %arg2[%c0_2, %c0_3, %c0_4] : memref<3x2x32xbf16, #tpu.memory_space<vmem>>, vector<1x2x32xbf16>
    %4 = vector.shape_cast %3 : vector<1x2x32xbf16> to vector<2x32xbf16>
    %cst = arith.constant dense<0.000000e+00> : vector<93x32xf32>
    %5 = tpu.matmul %2, %4, %cst {dimension_numbers = #tpu.dot_dimension_numbers<[1], [0], [0], [1], [0, 0, 1, 1], [], []>} : vector<93x2xbf16>, vector<2x32xbf16>, vector<93x32xf32> -> vector<93x32xf32>
    %6 = vector.extract_strided_slice %1 {offsets = [1, 0], sizes = [93, 2], strides = [1, 1]} : vector<95x2xbf16> to vector<93x2xbf16>
    %c1 = arith.constant 1 : index
    %c0_5 = arith.constant 0 : index
    %c0_6 = arith.constant 0 : index
    %7 = vector.load %arg2[%c1, %c0_5, %c0_6] : memref<3x2x32xbf16, #tpu.memory_space<vmem>>, vector<1x2x32xbf16>
    %8 = vector.shape_cast %7 : vector<1x2x32xbf16> to vector<2x32xbf16>
    %cst_7 = arith.constant dense<0.000000e+00> : vector<93x32xf32>
    %9 = tpu.matmul %6, %8, %cst_7 {dimension_numbers = #tpu.dot_dimension_numbers<[1], [0], [0], [1], [0, 0, 1, 1], [], []>} : vector<93x2xbf16>, vector<2x32xbf16>, vector<93x32xf32> -> vector<93x32xf32>
    %10 = arith.addf %5, %9 : vector<93x32xf32>
    %11 = vector.extract_strided_slice %1 {offsets = [2, 0], sizes = [93, 2], strides = [1, 1]} : vector<95x2xbf16> to vector<93x2xbf16>
    %c2 = arith.constant 2 : index
    %c0_8 = arith.constant 0 : index
    %c0_9 = arith.constant 0 : index
    %12 = vector.load %arg2[%c2, %c0_8, %c0_9] : memref<3x2x32xbf16, #tpu.memory_space<vmem>>, vector<1x2x32xbf16>
    %13 = vector.shape_cast %12 : vector<1x2x32xbf16> to vector<2x32xbf16>
    %cst_10 = arith.constant dense<0.000000e+00> : vector<93x32xf32>
    %14 = tpu.matmul %11, %13, %cst_10 {dimension_numbers = #tpu.dot_dimension_numbers<[1], [0], [0], [1], [0, 0, 1, 1], [], []>} : vector<93x2xbf16>, vector<2x32xbf16>, vector<93x32xf32> -> vector<93x32xf32>
    %15 = arith.addf %10, %14 : vector<93x32xf32>
    %16 = tpu.iota {dimensions = array<i32: 0>} : vector<47x93xi32>
    %17 = tpu.iota {dimensions = array<i32: 1>} : vector<47x93xi32>
    %c2_i32 = arith.constant 2 : i32
    %18 = vector.broadcast %c2_i32 : i32 to vector<47x93xi32>
    %19 = arith.muli %16, %18 : vector<47x93xi32>
    %20 = arith.cmpi eq, %17, %19 : vector<47x93xi32>
    %21 = arith.extui %20 : vector<47x93xi1> to vector<47x93xi32>
    %22 = arith.sitofp %21 : vector<47x93xi32> to vector<47x93xf32>
    %cst_11 = arith.constant dense<0.000000e+00> : vector<47x32xf32>
    %23 = tpu.matmul %22, %15, %cst_11 {dimension_numbers = #tpu.dot_dimension_numbers<[1], [0], [0], [1], [0, 0, 1, 1], [], []>} : vector<47x93xf32>, vector<93x32xf32>, vector<47x32xf32> -> vector<47x32xf32>
    %c0_12 = arith.constant 0 : index
    %c0_13 = arith.constant 0 : index
    %24 = vector.load %arg3[%c0_12, %c0_13] : memref<1x32xf32, #tpu.memory_space<vmem>>, vector<1x32xf32>
    %25 = vector.broadcast %24 : vector<1x32xf32> to vector<47x32xf32>
    %26 = arith.addf %23, %25 : vector<47x32xf32>
    %cst_14 = arith.constant 0.000000e+00 : f32
    %27 = vector.broadcast %cst_14 : f32 to vector<47x32xf32>
    %28 = arith.maximumf %26, %27 : vector<47x32xf32>
    %29 = arith.truncf %28 : vector<47x32xf32> to vector<47x32xbf16>
    %30 = vector.extract_strided_slice %29 {offsets = [0, 0], sizes = [45, 32], strides = [1, 1]} : vector<47x32xbf16> to vector<45x32xbf16>
    %c0_15 = arith.constant 0 : index
    %c0_16 = arith.constant 0 : index
    %c0_17 = arith.constant 0 : index
    %31 = vector.load %arg4[%c0_15, %c0_16, %c0_17] : memref<3x32x32xbf16, #tpu.memory_space<vmem>>, vector<1x32x32xbf16>
    %32 = vector.shape_cast %31 : vector<1x32x32xbf16> to vector<32x32xbf16>
    %cst_18 = arith.constant dense<0.000000e+00> : vector<45x32xf32>
    %33 = tpu.matmul %30, %32, %cst_18 {dimension_numbers = #tpu.dot_dimension_numbers<[1], [0], [0], [1], [0, 0, 1, 1], [], []>} : vector<45x32xbf16>, vector<32x32xbf16>, vector<45x32xf32> -> vector<45x32xf32>
    %34 = vector.extract_strided_slice %29 {offsets = [1, 0], sizes = [45, 32], strides = [1, 1]} : vector<47x32xbf16> to vector<45x32xbf16>
    %c1_19 = arith.constant 1 : index
    %c0_20 = arith.constant 0 : index
    %c0_21 = arith.constant 0 : index
    %35 = vector.load %arg4[%c1_19, %c0_20, %c0_21] : memref<3x32x32xbf16, #tpu.memory_space<vmem>>, vector<1x32x32xbf16>
    %36 = vector.shape_cast %35 : vector<1x32x32xbf16> to vector<32x32xbf16>
    %cst_22 = arith.constant dense<0.000000e+00> : vector<45x32xf32>
    %37 = tpu.matmul %34, %36, %cst_22 {dimension_numbers = #tpu.dot_dimension_numbers<[1], [0], [0], [1], [0, 0, 1, 1], [], []>} : vector<45x32xbf16>, vector<32x32xbf16>, vector<45x32xf32> -> vector<45x32xf32>
    %38 = arith.addf %33, %37 : vector<45x32xf32>
    %39 = vector.extract_strided_slice %29 {offsets = [2, 0], sizes = [45, 32], strides = [1, 1]} : vector<47x32xbf16> to vector<45x32xbf16>
    %c2_23 = arith.constant 2 : index
    %c0_24 = arith.constant 0 : index
    %c0_25 = arith.constant 0 : index
    %40 = vector.load %arg4[%c2_23, %c0_24, %c0_25] : memref<3x32x32xbf16, #tpu.memory_space<vmem>>, vector<1x32x32xbf16>
    %41 = vector.shape_cast %40 : vector<1x32x32xbf16> to vector<32x32xbf16>
    %cst_26 = arith.constant dense<0.000000e+00> : vector<45x32xf32>
    %42 = tpu.matmul %39, %41, %cst_26 {dimension_numbers = #tpu.dot_dimension_numbers<[1], [0], [0], [1], [0, 0, 1, 1], [], []>} : vector<45x32xbf16>, vector<32x32xbf16>, vector<45x32xf32> -> vector<45x32xf32>
    %43 = arith.addf %38, %42 : vector<45x32xf32>
    %c0_27 = arith.constant 0 : index
    %c0_28 = arith.constant 0 : index
    %44 = vector.load %arg5[%c0_27, %c0_28] : memref<1x32xf32, #tpu.memory_space<vmem>>, vector<1x32xf32>
    %45 = vector.broadcast %44 : vector<1x32xf32> to vector<45x32xf32>
    %46 = arith.addf %43, %45 : vector<45x32xf32>
    %cst_29 = arith.constant 0.000000e+00 : f32
    %47 = vector.broadcast %cst_29 : f32 to vector<45x32xf32>
    %48 = arith.maximumf %46, %47 : vector<45x32xf32>
    %49 = tpu.iota {dimensions = array<i32: 0>} : vector<47x45xi32>
    %50 = tpu.iota {dimensions = array<i32: 1>} : vector<47x45xi32>
    %c1_i32 = arith.constant 1 : i32
    %51 = vector.broadcast %c1_i32 : i32 to vector<47x45xi32>
    %52 = arith.addi %50, %51 : vector<47x45xi32>
    %53 = arith.cmpi eq, %49, %52 : vector<47x45xi32>
    %54 = arith.extui %53 : vector<47x45xi1> to vector<47x45xi32>
    %55 = arith.sitofp %54 : vector<47x45xi32> to vector<47x45xf32>
    %cst_30 = arith.constant dense<0.000000e+00> : vector<47x32xf32>
    %56 = tpu.matmul %55, %48, %cst_30 {dimension_numbers = #tpu.dot_dimension_numbers<[1], [0], [0], [1], [0, 0, 1, 1], [], []>} : vector<47x45xf32>, vector<45x32xf32>, vector<47x32xf32> -> vector<47x32xf32>
    %57 = arith.truncf %56 : vector<47x32xf32> to vector<47x32xbf16>
    %58 = vector.extract_strided_slice %57 {offsets = [0, 0], sizes = [45, 32], strides = [1, 1]} : vector<47x32xbf16> to vector<45x32xbf16>
    %c0_31 = arith.constant 0 : index
    %c0_32 = arith.constant 0 : index
    %c0_33 = arith.constant 0 : index
    %59 = vector.load %arg6[%c0_31, %c0_32, %c0_33] : memref<3x32x64xbf16, #tpu.memory_space<vmem>>, vector<1x32x64xbf16>
    %60 = vector.shape_cast %59 : vector<1x32x64xbf16> to vector<32x64xbf16>
    %cst_34 = arith.constant dense<0.000000e+00> : vector<45x64xf32>
    %61 = tpu.matmul %58, %60, %cst_34 {dimension_numbers = #tpu.dot_dimension_numbers<[1], [0], [0], [1], [0, 0, 1, 1], [], []>} : vector<45x32xbf16>, vector<32x64xbf16>, vector<45x64xf32> -> vector<45x64xf32>
    %62 = vector.extract_strided_slice %57 {offsets = [1, 0], sizes = [45, 32], strides = [1, 1]} : vector<47x32xbf16> to vector<45x32xbf16>
    %c1_35 = arith.constant 1 : index
    %c0_36 = arith.constant 0 : index
    %c0_37 = arith.constant 0 : index
    %63 = vector.load %arg6[%c1_35, %c0_36, %c0_37] : memref<3x32x64xbf16, #tpu.memory_space<vmem>>, vector<1x32x64xbf16>
    %64 = vector.shape_cast %63 : vector<1x32x64xbf16> to vector<32x64xbf16>
    %cst_38 = arith.constant dense<0.000000e+00> : vector<45x64xf32>
    %65 = tpu.matmul %62, %64, %cst_38 {dimension_numbers = #tpu.dot_dimension_numbers<[1], [0], [0], [1], [0, 0, 1, 1], [], []>} : vector<45x32xbf16>, vector<32x64xbf16>, vector<45x64xf32> -> vector<45x64xf32>
    %66 = arith.addf %61, %65 : vector<45x64xf32>
    %67 = vector.extract_strided_slice %57 {offsets = [2, 0], sizes = [45, 32], strides = [1, 1]} : vector<47x32xbf16> to vector<45x32xbf16>
    %c2_39 = arith.constant 2 : index
    %c0_40 = arith.constant 0 : index
    %c0_41 = arith.constant 0 : index
    %68 = vector.load %arg6[%c2_39, %c0_40, %c0_41] : memref<3x32x64xbf16, #tpu.memory_space<vmem>>, vector<1x32x64xbf16>
    %69 = vector.shape_cast %68 : vector<1x32x64xbf16> to vector<32x64xbf16>
    %cst_42 = arith.constant dense<0.000000e+00> : vector<45x64xf32>
    %70 = tpu.matmul %67, %69, %cst_42 {dimension_numbers = #tpu.dot_dimension_numbers<[1], [0], [0], [1], [0, 0, 1, 1], [], []>} : vector<45x32xbf16>, vector<32x64xbf16>, vector<45x64xf32> -> vector<45x64xf32>
    %71 = arith.addf %66, %70 : vector<45x64xf32>
    %c0_43 = arith.constant 0 : index
    %c0_44 = arith.constant 0 : index
    %72 = vector.load %arg7[%c0_43, %c0_44] : memref<1x64xf32, #tpu.memory_space<vmem>>, vector<1x64xf32>
    %73 = vector.broadcast %72 : vector<1x64xf32> to vector<45x64xf32>
    %74 = arith.addf %71, %73 : vector<45x64xf32>
    %cst_45 = arith.constant 0.000000e+00 : f32
    %75 = vector.broadcast %cst_45 : f32 to vector<45x64xf32>
    %76 = arith.maximumf %74, %75 : vector<45x64xf32>
    %77 = arith.truncf %76 : vector<45x64xf32> to vector<45x64xbf16>
    %c0_46 = arith.constant 0 : index
    %c0_47 = arith.constant 0 : index
    %c0_48 = arith.constant 0 : index
    %78 = vector.load %arg8[%c0_46, %c0_47, %c0_48] : memref<1x45x64xbf16, #tpu.memory_space<vmem>>, vector<1x45x64xbf16>
    %79 = vector.shape_cast %78 : vector<1x45x64xbf16> to vector<45x64xbf16>
    %80 = vector.shape_cast %77 : vector<45x64xbf16> to vector<1x45x64xbf16>
    tpu.vector_store %arg8[%c0_46, %c0_47, %c0_48], %80 {strides = array<i32>} : memref<1x45x64xbf16, #tpu.memory_space<vmem>>, vector<1x45x64xbf16>,
    return
  }
  func.func @transform_0(%arg0: i32) -> (i32, i32, i32) {
    %c0_i32 = arith.constant 0 : i32
    %c0_i32_0 = arith.constant 0 : i32
    %c0_i32_1 = arith.constant 0 : i32
    return %arg0, %c0_i32, %c0_i32_0 : i32, i32, i32
  }
  func.func @transform_1(%arg0: i32) -> (i32, i32, i32) {
    %c0_i32 = arith.constant 0 : i32
    %c0_i32_0 = arith.constant 0 : i32
    %c0_i32_1 = arith.constant 0 : i32
    %c0_i32_2 = arith.constant 0 : i32
    return %c0_i32, %c0_i32_0, %c0_i32_1 : i32, i32, i32
  }
  func.func @transform_2(%arg0: i32) -> (i32, i32) {
    %c0_i32 = arith.constant 0 : i32
    %c0_i32_0 = arith.constant 0 : i32
    %c0_i32_1 = arith.constant 0 : i32
    return %c0_i32, %c0_i32_0 : i32, i32
  }
  func.func @transform_3(%arg0: i32) -> (i32, i32, i32) {
    %c0_i32 = arith.constant 0 : i32
    %c0_i32_0 = arith.constant 0 : i32
    %c0_i32_1 = arith.constant 0 : i32
    %c0_i32_2 = arith.constant 0 : i32
    return %c0_i32, %c0_i32_0, %c0_i32_1 : i32, i32, i32
  }
  func.func @transform_4(%arg0: i32) -> (i32, i32) {
    %c0_i32 = arith.constant 0 : i32
    %c0_i32_0 = arith.constant 0 : i32
    %c0_i32_1 = arith.constant 0 : i32
    return %c0_i32, %c0_i32_0 : i32, i32
  }
  func.func @transform_5(%arg0: i32) -> (i32, i32, i32) {
    %c0_i32 = arith.constant 0 : i32
    %c0_i32_0 = arith.constant 0 : i32
    %c0_i32_1 = arith.constant 0 : i32
    %c0_i32_2 = arith.constant 0 : i32
    return %c0_i32, %c0_i32_0, %c0_i32_1 : i32, i32, i32
  }
  func.func @transform_6(%arg0: i32) -> (i32, i32) {
    %c0_i32 = arith.constant 0 : i32
    %c0_i32_0 = arith.constant 0 : i32
    %c0_i32_1 = arith.constant 0 : i32
    return %c0_i32, %c0_i32_0 : i32, i32
  }
  func.func @transform_7(%arg0: i32) -> (i32, i32, i32) {
    %c0_i32 = arith.constant 0 : i32
    %c0_i32_0 = arith.constant 0 : i32
    %c0_i32_1 = arith.constant 0 : i32
    return %arg0, %c0_i32, %c0_i32_0 : i32, i32, i32
  }
}

</mosaic_0001>

<llo_original>
// kernel: _run_block.1
$region0: #{_run_block.1}
  #allocation0 [shape = 'u32[]', space=smem, size = 0x4, offset = 0x4, fixed_abs, tag = 'smem constant byte address 0x4 - core index']
  #allocation1 [shape = 'u32[72,128]{1,0:T(1,128)}', space=vmem, size = 0x9000, scoped, tag = 'internal scratch']
  %s0 = inlined_call_operand.vmem [shape: bf16[2,95,2], index: 0, kind: input, shape index: {}]
  %s1 = inlined_call_operand.hbm [shape: bf16[3,2,32], index: 1, kind: input, shape index: {}]
  %s2 = inlined_call_operand.vmem [shape: f32[1,32], index: 2, kind: input, shape index: {}]
  %s3 = inlined_call_operand.vmem [shape: bf16[3,32,32], index: 3, kind: input, shape index: {}]
  %s4 = inlined_call_operand.vmem [shape: f32[1,32], index: 4, kind: input, shape index: {}]
  %s5 = inlined_call_operand.vmem [shape: bf16[3,32,64], index: 5, kind: input, shape index: {}]
  %s6 = inlined_call_operand.vmem [shape: f32[1,64], index: 6, kind: input, shape index: {}]
  %s7 = inlined_call_operand.vmem [shape: bf16[2,45,64], index: 7, kind: output, shape index: {}]
  %s8 = sld [smem:[#allocation0]]
  $region65: #{_run_block.1} parent=0
    _
  %s10 = ssub.s32 1, %s8
  %s11 = scalar_select 0, %s10, %s8
  $region1: #{_run_block.1} parent=0
    #allocation2 [shape = 'u8[1536]{0}', space=vmem, size = 0x800, scoped, tag = 'input window, operand 1, single buffered']
    #allocation3 [shape = 's32[2]{0}', space=sflag, size = 0x8, scoped, tag = 'scoped memory for _run_block.1']
    %12 = vsyncpa [#allocation3], 0
    loop: start=0, step=1, limit=4
    $region2: #{_run_block.1} parent=1 // loop_pre_header
      _
    $region3: #{_run_block.1} parent=1 // loop_header
      %s14 = sphi 0, %s18
      %p15 = scmp.ge.s32.totalorder %s14, 4
      %s24 = sphi 0, %s26
      %s27 = sphi 0, %s24
      %s28 = sphi 0, %s27
      %s44 = sphi 0, %s28
      %s48 = sphi 0, %s48
      %s50 = sphi 0, %s48
      %s51 = sphi 0, %s50
      %s65 = sphi 0, %s51
      %s69 = sphi 0, %s69
      %s71 = sphi 0, %s69
      %s72 = sphi 0, %s71
      %s86 = sphi 0, %s72
      %s90 = sphi 0, %s90
      %s92 = sphi 0, %s90
      %s93 = sphi 0, %s92
      %s107 = sphi 0, %s93
      %s111 = sphi 0, %s111
      %s113 = sphi 0, %s111
      %s114 = sphi 0, %s113
      %s128 = sphi 0, %s114
      %s132 = sphi 0, %s132
      %s134 = sphi 0, %s132
      %s135 = sphi 0, %s134
      %s149 = sphi 0, %s135
      %s153 = sphi 0, %s153
      %s155 = sphi 0, %s153
      %s156 = sphi 0, %s155
      %s170 = sphi 0, %s156
      %s176 = sphi 0, %s178
      %s179 = sphi 0, %s176
      %s180 = sphi 0, %s179
      %s196 = sphi 0, %s180
    $region4: #{_run_block.1} parent=1 // loop_header_branch
      %17 = sbr.rel (%p15) target = $region8
    $region5: #{_run_block.1} parent=1 // loop_body
      %s19 = ssub.s32 %s14, 1
      %s20 = ssub.s32 %s14, 2
      %s21 = sadd.s32 %s14, 1
      %s22 = ssub.s32 %s14, %s21
      %p23 = scmp.eq.s32.totalorder %s22, 0
      %s25 = sadd.s32 %s24, 1
      %s26 = scalar_select %p23, %s24, %s25
      %p29 = pneg %p23
      %p30 = scmp.eq.s32.totalorder %s14, 1
      %p31 = por %p29, %p30
      %p32 = scmp.ne.s32.totalorder %s24, %s27
      %p33 = scmp.eq.s32.totalorder %s14, 0
      %p34 = por %p32, %p33
      %p35 = scmp.ne.s32.totalorder %s24, %s27
      %p36 = scmp.eq.s32.totalorder %s19, 1
      %p37 = por %p35, %p36
      %p38 = scmp.ne.s32.totalorder %s27, %s28
      %p39 = scmp.eq.s32.totalorder %s19, 0
      %p40 = por %p38, %p39
      %p41 = scmp.ne.s32.totalorder %s27, %s28
      %p42 = scmp.eq.s32.totalorder %s20, 1
      %p43 = por %p41, %p42
      %p45 = scmp.ne.s32.totalorder %s28, %s44
      %p46 = scmp.eq.s32.totalorder %s20, 0
      %p47 = por %p45, %p46
      %s49 = sadd.s32 %s48, 1
      %p52 = scmp.eq.s32.totalorder %s14, 1
      %p53 = scmp.ne.s32.totalorder %s48, %s50
      %p54 = scmp.eq.s32.totalorder %s14, 0
      %p55 = por %p53, %p54
      %p56 = scmp.ne.s32.totalorder %s48, %s50
      %p57 = scmp.eq.s32.totalorder %s19, 1
      %p58 = por %p56, %p57
      %p59 = scmp.ne.s32.totalorder %s50, %s51
      %p60 = scmp.eq.s32.totalorder %s19, 0
      %p61 = por %p59, %p60
      %p62 = scmp.ne.s32.totalorder %s50, %s51
      %p63 = scmp.eq.s32.totalorder %s20, 1
      %p64 = por %p62, %p63
      %p66 = scmp.ne.s32.totalorder %s51, %s65
      %p67 = scmp.eq.s32.totalorder %s20, 0
      %p68 = por %p66, %p67
      %s70 = sadd.s32 %s69, 1
      %p73 = scmp.eq.s32.totalorder %s14, 1
      %p74 = scmp.ne.s32.totalorder %s69, %s71
      %p75 = scmp.eq.s32.totalorder %s14, 0
      %p76 = por %p74, %p75
      %p77 = scmp.ne.s32.totalorder %s69, %s71
      %p78 = scmp.eq.s32.totalorder %s19, 1
      %p79 = por %p77, %p78
      %p80 = scmp.ne.s32.totalorder %s71, %s72
      %p81 = scmp.eq.s32.totalorder %s19, 0
      %p82 = por %p80, %p81
      %p83 = scmp.ne.s32.totalorder %s71, %s72
      %p84 = scmp.eq.s32.totalorder %s20, 1
      %p85 = por %p83, %p84
      %p87 = scmp.ne.s32.totalorder %s72, %s86
      %p88 = scmp.eq.s32.totalorder %s20, 0
      %p89 = por %p87, %p88
      %s91 = sadd.s32 %s90, 1
      %p94 = scmp.eq.s32.totalorder %s14, 1
      %p95 = scmp.ne.s32.totalorder %s90, %s92
      %p96 = scmp.eq.s32.totalorder %s14, 0
      %p97 = por %p95, %p96
      %p98 = scmp.ne.s32.totalorder %s90, %s92
      %p99 = scmp.eq.s32.totalorder %s19, 1
      %p100 = por %p98, %p99
      %p101 = scmp.ne.s32.totalorder %s92, %s93
      %p102 = scmp.eq.s32.totalorder %s19, 0
      %p103 = por %p101, %p102
      %p104 = scmp.ne.s32.totalorder %s92, %s93
      %p105 = scmp.eq.s32.totalorder %s20, 1
      %p106 = por %p104, %p105
      %p108 = scmp.ne.s32.totalorder %s93, %s107
      %p109 = scmp.eq.s32.totalorder %s20, 0
      %p110 = por %p108, %p109
      %s112 = sadd.s32 %s111, 1
      %p115 = scmp.eq.s32.totalorder %s14, 1
      %p116 = scmp.ne.s32.totalorder %s111, %s113
      %p117 = scmp.eq.s32.totalorder %s14, 0
      %p118 = por %p116, %p117
      %p119 = scmp.ne.s32.totalorder %s111, %s113
      %p120 = scmp.eq.s32.totalorder %s19, 1
      %p121 = por %p119, %p120
      %p122 = scmp.ne.s32.totalorder %s113, %s114
      %p123 = scmp.eq.s32.totalorder %s19, 0
      %p124 = por %p122, %p123
      %p125 = scmp.ne.s32.totalorder %s113, %s114
      %p126 = scmp.eq.s32.totalorder %s20, 1
      %p127 = por %p125, %p126
      %p129 = scmp.ne.s32.totalorder %s114, %s128
      %p130 = scmp.eq.s32.totalorder %s20, 0
      %p131 = por %p129, %p130
      %s133 = sadd.s32 %s132, 1
      %p136 = scmp.eq.s32.totalorder %s14, 1
      %p137 = scmp.ne.s32.totalorder %s132, %s134
      %p138 = scmp.eq.s32.totalorder %s14, 0
      %p139 = por %p137, %p138
      %p140 = scmp.ne.s32.totalorder %s132, %s134
      %p141 = scmp.eq.s32.totalorder %s19, 1
      %p142 = por %p140, %p141
      %p143 = scmp.ne.s32.totalorder %s134, %s135
      %p144 = scmp.eq.s32.totalorder %s19, 0
      %p145 = por %p143, %p144
      %p146 = scmp.ne.s32.totalorder %s134, %s135
      %p147 = scmp.eq.s32.totalorder %s20, 1
      %p148 = por %p146, %p147
      %p150 = scmp.ne.s32.totalorder %s135, %s149
      %p151 = scmp.eq.s32.totalorder %s20, 0
      %p152 = por %p150, %p151
      %s154 = sadd.s32 %s153, 1
      %p157 = scmp.eq.s32.totalorder %s14, 1
      %p158 = scmp.ne.s32.totalorder %s153, %s155
      %p159 = scmp.eq.s32.totalorder %s14, 0
      %p160 = por %p158, %p159
      %p161 = scmp.ne.s32.totalorder %s153, %s155
      %p162 = scmp.eq.s32.totalorder %s19, 1
      %p163 = por %p161, %p162
      %p164 = scmp.ne.s32.totalorder %s155, %s156
      %p165 = scmp.eq.s32.totalorder %s19, 0
      %p166 = por %p164, %p165
      %p167 = scmp.ne.s32.totalorder %s155, %s156
      %p168 = scmp.eq.s32.totalorder %s20, 1
      %p169 = por %p167, %p168
      %p171 = scmp.ne.s32.totalorder %s156, %s170
      %p172 = scmp.eq.s32.totalorder %s20, 0
      %p173 = por %p171, %p172
      %s174 = ssub.s32 %s14, %s21
      %p175 = scmp.eq.s32.totalorder %s174, 0
      %s177 = sadd.s32 %s176, 1
      %s178 = scalar_select %p175, %s176, %s177
      %p181 = pneg %p175
      %p182 = scmp.eq.s32.totalorder %s14, 1
      %p183 = por %p181, %p182
      %p184 = scmp.ne.s32.totalorder %s176, %s179
      %p185 = scmp.eq.s32.totalorder %s14, 0
      %p186 = por %p184, %p185
      %p187 = scmp.ne.s32.totalorder %s176, %s179
      %p188 = scmp.eq.s32.totalorder %s19, 1
      %p189 = por %p187, %p188
      %p190 = scmp.ne.s32.totalorder %s179, %s180
      %p191 = scmp.eq.s32.totalorder %s19, 0
      %p192 = por %p190, %p191
      %p193 = scmp.ne.s32.totalorder %s179, %s180
      %p194 = scmp.eq.s32.totalorder %s20, 1
      %p195 = por %p193, %p194
      %p197 = scmp.ne.s32.totalorder %s180, %s196
      %p198 = scmp.eq.s32.totalorder %s20, 0
      %p199 = por %p197, %p198
      %p200 = scmp.le.s32.totalorder 1, %s14
      %p201 = scmp.lt.s32.totalorder %s14, 3
      %p202 = pnand %p200, %p201
      %p203 = pneg %p202
      // Predicated region
      $region9: #{_run_block.1} parent=5 // pred_check
        _
      $region10: #{_run_block.1} parent=5 // pred_check_branch
        %205 = sbr.rel (%p202) target = $region12
      $region11: #{_run_block.1} parent=5 // pred_region
        %s206 = ssub.s32 %s14, 1
        // Predicated region
        $region13: #{_run_block.1} parent=11 // pred_check
          %p207 = pneg %p61
        $region14: #{_run_block.1} parent=11 // pred_check_branch
          %209 = sbr.rel (%p207) target = $region16
        $region15: #{_run_block.1} parent=11 // pred_region
          %211 = vsyncadd [#allocation3], 0
          %s212 = sshll.u32 %s1, 4
          %s213 = int_to_ptr.hbm [resolvable:$true] %s212
          %s214 = sshll.u32 [#allocation2], 4
          %s215 = int_to_ptr.vmem [resolvable:$true] %s214
          %220 = dma.hbm_to_vmem [thread:$0]  %s213, 48, %s215, [#allocation3], 16, 16, 1
        $region16: #{_run_block.1} parent=11 // pred_fallthru
          _
        // Predicated region
        $region17: #{_run_block.1} parent=11 // pred_check
          %p221 = pneg %p82
        $region18: #{_run_block.1} parent=11 // pred_check_branch
          %223 = sbr.rel (%p221) target = $region20
        $region19: #{_run_block.1} parent=11 // pred_region
          _
        $region20: #{_run_block.1} parent=11 // pred_fallthru
          _
        // Predicated region
        $region21: #{_run_block.1} parent=11 // pred_check
          %p224 = pneg %p103
        $region22: #{_run_block.1} parent=11 // pred_check_branch
          %226 = sbr.rel (%p224) target = $region24
        $region23: #{_run_block.1} parent=11 // pred_region
          _
        $region24: #{_run_block.1} parent=11 // pred_fallthru
          _
        // Predicated region
        $region25: #{_run_block.1} parent=11 // pred_check
          %p227 = pneg %p124
        $region26: #{_run_block.1} parent=11 // pred_check_branch
          %229 = sbr.rel (%p227) target = $region28
        $region27: #{_run_block.1} parent=11 // pred_region
          _
        $region28: #{_run_block.1} parent=11 // pred_fallthru
          _
        // Predicated region
        $region29: #{_run_block.1} parent=11 // pred_check
          %p230 = pneg %p145
        $region30: #{_run_block.1} parent=11 // pred_check_branch
          %232 = sbr.rel (%p230) target = $region32
        $region31: #{_run_block.1} parent=11 // pred_region
          _
        $region32: #{_run_block.1} parent=11 // pred_fallthru
          _
        // Predicated region
        $region33: #{_run_block.1} parent=11 // pred_check
          %p233 = pneg %p166
        $region34: #{_run_block.1} parent=11 // pred_check_branch
          %235 = sbr.rel (%p233) target = $region36
        $region35: #{_run_block.1} parent=11 // pred_region
          _
        $region36: #{_run_block.1} parent=11 // pred_fallthru
          _
      $region12: #{_run_block.1} parent=5 // pred_fallthru
        _
      %p236 = scmp.lt.s32.totalorder %s14, 2
      // Predicated region
      $region37: #{_run_block.1} parent=5 // pred_check
        %p237 = pneg %p236
      $region38: #{_run_block.1} parent=5 // pred_check_branch
        %239 = sbr.rel (%p237) target = $region40
      $region39: #{_run_block.1} parent=5 // pred_region
        // Predicated region
        $region41: #{_run_block.1} parent=39 // pred_check
          %p240 = pneg %p34
        $region42: #{_run_block.1} parent=39 // pred_check_branch
          %242 = sbr.rel (%p240) target = $region44
        $region43: #{_run_block.1} parent=39 // pred_region
          %p243 = scmp.lt.s32.totalorder %s14, 1
          %s244 = scalar_select %p243, %s14, 1
          %s245 = smul.addr %s244, 12
          %s246 = smul.addr %s245, 4
          %s247 = scalar_lea.vmem %s0, %s246
        $region44: #{_run_block.1} parent=39 // pred_fallthru
          _
      $region40: #{_run_block.1} parent=5 // pred_fallthru
        _
      %p248 = scmp.le.s32.totalorder 1, %s14
      %p249 = scmp.lt.s32.totalorder %s14, 3
      %p250 = pnand %p248, %p249
      %p251 = pneg %p250
      // Predicated region
      $region45: #{_run_block.1} parent=5 // pred_check
        _
      $region46: #{_run_block.1} parent=5 // pred_check_branch
        %253 = sbr.rel (%p250) target = $region48
      $region47: #{_run_block.1} parent=5 // pred_region
        %s254 = ssub.s32 %s14, 1
        // Predicated region
        $region49: #{_run_block.1} parent=47 // pred_check
          %p255 = pneg %p61
        $region50: #{_run_block.1} parent=47 // pred_check_branch
          %257 = sbr.rel (%p255) target = $region52
        $region51: #{_run_block.1} parent=47 // pred_region
          %259 = dma.done [#allocation3], 48
        $region52: #{_run_block.1} parent=47 // pred_fallthru
          _
        %p260 = scmp.lt.s32.totalorder %s19, 1
        %s261 = scalar_select %p260, %s19, 1
        %s262 = smul.addr %s261, 12
        %s263 = smul.addr %s262, 4
        %s264 = scalar_lea.vmem %s0, %s263
        %p265 = pneg %p40
        %p266 = pneg %p37
        %p267 = pneg %p61
        %p268 = pneg %p58
        %p269 = pneg %p82
        %p270 = pneg %p79
        %p271 = pneg %p103
        %p272 = pneg %p100
        %p273 = pneg %p124
        %p274 = pneg %p121
        %p275 = pneg %p145
        %p276 = pneg %p142
        %p277 = pneg %p166
        %p278 = pneg %p163
        %p279 = pneg %p192
        %p280 = pneg %p189
        %p281 = scmp.lt.s32.totalorder %s19, 1
        %s282 = scalar_select %p281, %s19, 1
        %s283 = smul.addr %s282, 6
        %s284 = smul.addr %s283, 4
        %s285 = scalar_lea.vmem %s7, %s284
        %p286 = scmp.lt.s32.totalorder %s19, 1
        %s287 = scalar_select %p286, %s19, 1
        %s288 = smul.addr %s287, 12
        %s289 = smul.addr %s288, 4
        %s290 = scalar_lea.vmem %s0, %s289
        %p291 = scmp.lt.s32.totalorder %s19, 1
        %s292 = scalar_select %p291, %s19, 1
        %s293 = smul.addr %s292, 6
        %s294 = smul.addr %s293, 4
        %s295 = scalar_lea.vmem %s7, %s294
        %v297 = vld [vmem:[%s290] sm:$0xf]
        %v298 = vld [vmem:[%s290 + $0x4] sm:$0xf]
        %v299 = vld [vmem:[%s290 + $0x8] sm:$0xf]
        %v300 = vld [vmem:[%s290 + $0xc] sm:$0xf]
        %v301 = vld [vmem:[%s290 + $0x10] sm:$0xf]
        %v302 = vld [vmem:[%s290 + $0x14] sm:$0xf]
        %v303 = vld [vmem:[%s290 + $0x18] sm:$0xf]
        %v304 = vld [vmem:[%s290 + $0x1c] sm:$0xf]
        %v305 = vld [vmem:[%s290 + $0x20] sm:$0xf]
        %v306 = vld [vmem:[%s290 + $0x24] sm:$0xf]
        %v307 = vld [vmem:[%s290 + $0x28] sm:$0xf]
        %v308 = vld [vmem:[%s290 + $0x2c] sm:$0xf]
        %v309 = vld [vmem:[#allocation2] sm:$0x1]
        %s310 = scalar_lea.vmem [#allocation2], 1
        %v311 = vld [vmem:[%s310] sm:$0x1]
        %v324 = vunpack.c.l.b16 %v297
        %v325 = vunpack.c.l.b16 %v298
        %v326 = vunpack.c.l.b16 %v299
        %v327 = vunpack.c.l.b16 %v300
        %v328 = vunpack.c.l.b16 %v301
        %v329 = vunpack.c.l.b16 %v302
        %v330 = vunpack.c.l.b16 %v303
        %v331 = vunpack.c.l.b16 %v304
        %v332 = vunpack.c.l.b16 %v305
        %v333 = vunpack.c.l.b16 %v306
        %v334 = vunpack.c.l.b16 %v307
        %v335 = vunpack.c.l.b16 %v308
        %v336 = vpack.c.b16 %v325, %v324
        %v337 = vpack.c.b16 %v327, %v326
        %v338 = vpack.c.b16 %v329, %v328
        %v339 = vpack.c.b16 %v331, %v330
        %v340 = vpack.c.b16 %v333, %v332
        %v341 = vpack.c.b16 %v335, %v334
        %vm342 = vsmask.f32 7424
        %v344 = vshrl.u32 %v336, 16
        %v346 = vshll.u32 %v336, 16
        %v348 = vrot.slane %v346, 1
        %v349 = vor.u32 %v344, %v348
        %v351 = vshll.u32 %v337, 16
        %v353 = vrot.slane %v351, 1
        %v354 = vsel %vm342, %v349, %v353
        %v355 = vshrl.u32 %v337, 16
        %v357 = vor.u32 %v355, %v353
        %v359 = vshll.u32 %v338, 16
        %v361 = vrot.slane %v359, 1
        %v362 = vsel %vm342, %v357, %v361
        %v363 = vshrl.u32 %v338, 16
        %v365 = vor.u32 %v363, %v361
        %v367 = vshll.u32 %v339, 16
        %v369 = vrot.slane %v367, 1
        %v370 = vsel %vm342, %v365, %v369
        %v371 = vshrl.u32 %v339, 16
        %v373 = vor.u32 %v371, %v369
        %v375 = vshll.u32 %v340, 16
        %v377 = vrot.slane %v375, 1
        %v378 = vsel %vm342, %v373, %v377
        %v379 = vshrl.u32 %v340, 16
        %v381 = vor.u32 %v379, %v377
        %v383 = vshll.u32 %v341, 16
        %v385 = vrot.slane %v383, 1
        %v386 = vsel %vm342, %v381, %v385
        %v387 = vshrl.u32 %v341, 16
        %v389 = vor.u32 %v387, %v385
        %vm390 = vcmask 15360
        %v392 = vsel %vm390, %v354, 0
        %v395 = vsel %vm390, %v362, 0
        %v398 = vsel %vm390, %v370, 0
        %v401 = vsel %vm390, %v378, 0
        %v404 = vsel %vm390, %v386, 0
        %v407 = vsel %vm390, %v389, 0
        %vm409 = vcmask 1040384
        %v411 = vsel %vm409, %v311, 0
        %413 = vmatpush.bf16.msra.mxu0 0
        %414 = vmatpush.bf16.msra.mxu0 0
        %415 = vmatpush.bf16.msra.mxu0 0
        %416 = vmatpush.bf16.msra.mxu0 0
        %417 = vmatpush.bf16.msra.mxu0 0
        %418 = vmatpush.bf16.msra.mxu0 0
        %419 = vmatpush.bf16.msra.mxu0 0
        %420 = vmatpush.bf16.msra.mxu0 %v411
        %421 = vmatmul.bf16.gmra.mxu0 %v392
        %v422 = vpop.f32.mrf.mxu0
        %v423 = vadd.f32 0.0, %v422
        %v424 = vpop.f32.mrf.mxu0
        %v425 = vadd.f32 0.0, %v424
        %426 = vmatmul.bf16.gmra.mxu0 %v395
        %v427 = vpop.f32.mrf.mxu0
        %v428 = vadd.f32 0.0, %v427
        %v429 = vpop.f32.mrf.mxu0
        %v430 = vadd.f32 0.0, %v429
        %431 = vmatmul.bf16.gmra.mxu0 %v398
        %v432 = vpop.f32.mrf.mxu0
        %v433 = vadd.f32 0.0, %v432
        %v434 = vpop.f32.mrf.mxu0
        %v435 = vadd.f32 0.0, %v434
        %436 = vmatmul.bf16.gmra.mxu0 %v401
        %v437 = vpop.f32.mrf.mxu0
        %v438 = vadd.f32 0.0, %v437
        %v439 = vpop.f32.mrf.mxu0
        %v440 = vadd.f32 0.0, %v439
        %441 = vmatmul.bf16.gmra.mxu0 %v404
        %v442 = vpop.f32.mrf.mxu0
        %v443 = vadd.f32 0.0, %v442
        %v444 = vpop.f32.mrf.mxu0
        %v445 = vadd.f32 0.0, %v444
        %446 = vmatmul.bf16.gmra.mxu0 %v407
        %v447 = vpop.f32.mrf.mxu0
        %v448 = vadd.f32 0.0, %v447
        %v449 = vpop.f32.mrf.mxu0
        %v450 = vadd.f32 0.0, %v449
        %451 = vdwg.mxu0
        %v452 = vsel %vm390, %v336, 0
        %v454 = vsel %vm390, %v337, 0
        %v456 = vsel %vm390, %v338, 0
        %v458 = vsel %vm390, %v339, 0
        %v460 = vsel %vm390, %v340, 0
        %v462 = vsel %vm390, %v341, 0
        %v465 = vsel %vm409, %v309, 0
        %467 = vmatpush.bf16.msra.mxu0 0
        %468 = vmatpush.bf16.msra.mxu0 0
        %469 = vmatpush.bf16.msra.mxu0 0
        %470 = vmatpush.bf16.msra.mxu0 0
        %471 = vmatpush.bf16.msra.mxu0 0
        %472 = vmatpush.bf16.msra.mxu0 0
        %473 = vmatpush.bf16.msra.mxu0 0
        %474 = vmatpush.bf16.msra.mxu0 %v465
        %475 = vmatmul.bf16.gmra.mxu0 %v452
        %v476 = vpop.f32.mrf.mxu0
        %v477 = vadd.f32 %v423, %v476
        %v478 = vpop.f32.mrf.mxu0
        %v479 = vadd.f32 %v425, %v478
        %480 = vmatmul.bf16.gmra.mxu0 %v454
        %v481 = vpop.f32.mrf.mxu0
        %v482 = vadd.f32 %v428, %v481
        %v483 = vpop.f32.mrf.mxu0
        %v484 = vadd.f32 %v430, %v483
        %485 = vmatmul.bf16.gmra.mxu0 %v456
        %v486 = vpop.f32.mrf.mxu0
        %v487 = vadd.f32 %v433, %v486
        %v488 = vpop.f32.mrf.mxu0
        %v489 = vadd.f32 %v435, %v488
        %490 = vmatmul.bf16.gmra.mxu0 %v458
        %v491 = vpop.f32.mrf.mxu0
        %v492 = vadd.f32 %v438, %v491
        %v493 = vpop.f32.mrf.mxu0
        %v494 = vadd.f32 %v440, %v493
        %495 = vmatmul.bf16.gmra.mxu0 %v460
        %v496 = vpop.f32.mrf.mxu0
        %v497 = vadd.f32 %v443, %v496
        %v498 = vpop.f32.mrf.mxu0
        %v499 = vadd.f32 %v445, %v498
        %500 = vmatmul.bf16.gmra.mxu0 %v462
        %v501 = vpop.f32.mrf.mxu0
        %v502 = vadd.f32 %v448, %v501
        %v503 = vpop.f32.mrf.mxu0
        %v504 = vadd.f32 %v450, %v503
        %505 = vdwg.mxu0
        %s506 = scalar_lea.vmem [#allocation2], 2
        %v507 = vld [vmem:[%s506] sm:$0x1]
        %vm508 = vcmask 1046528
        %v509 = vrot.slane %v336, 1
        %v510 = vrot.slane %v337, 1
        %v511 = vsel %vm508, %v509, %v510
        %v512 = vrot.slane %v338, 1
        %v513 = vsel %vm508, %v510, %v512
        %v514 = vrot.slane %v339, 1
        %v515 = vsel %vm508, %v512, %v514
        %v516 = vrot.slane %v340, 1
        %v517 = vsel %vm508, %v514, %v516
        %v518 = vrot.slane %v341, 1
        %v519 = vsel %vm508, %v516, %v518
        %v521 = vsel %vm390, %v511, 0
        %v524 = vsel %vm390, %v513, 0
        %v527 = vsel %vm390, %v515, 0
        %v530 = vsel %vm390, %v517, 0
        %v533 = vsel %vm390, %v519, 0
        %v536 = vsel %vm390, %v518, 0
        %v539 = vsel %vm409, %v507, 0
        %541 = vmatpush.bf16.msra.mxu0 0
        %542 = vmatpush.bf16.msra.mxu0 0
        %543 = vmatpush.bf16.msra.mxu0 0
        %544 = vmatpush.bf16.msra.mxu0 0
        %545 = vmatpush.bf16.msra.mxu0 0
        %546 = vmatpush.bf16.msra.mxu0 0
        %547 = vmatpush.bf16.msra.mxu0 0
        %548 = vmatpush.bf16.msra.mxu0 %v539
        %549 = vmatmul.bf16.gmra.mxu0 %v521
        %v550 = vpop.f32.mrf.mxu0
        %v551 = vadd.f32 0.0, %v550
        %v552 = vpop.f32.mrf.mxu0
        %v553 = vadd.f32 0.0, %v552
        %554 = vmatmul.bf16.gmra.mxu0 %v524
        %v555 = vpop.f32.mrf.mxu0
        %v556 = vadd.f32 0.0, %v555
        %v557 = vpop.f32.mrf.mxu0
        %v558 = vadd.f32 0.0, %v557
        %559 = vmatmul.bf16.gmra.mxu0 %v527
        %v560 = vpop.f32.mrf.mxu0
        %v561 = vadd.f32 0.0, %v560
        %v562 = vpop.f32.mrf.mxu0
        %v563 = vadd.f32 0.0, %v562
        %564 = vmatmul.bf16.gmra.mxu0 %v530
        %v565 = vpop.f32.mrf.mxu0
        %v566 = vadd.f32 0.0, %v565
        %v567 = vpop.f32.mrf.mxu0
        %v568 = vadd.f32 0.0, %v567
        %569 = vmatmul.bf16.gmra.mxu0 %v533
        %v570 = vpop.f32.mrf.mxu0
        %v571 = vadd.f32 0.0, %v570
        %v572 = vpop.f32.mrf.mxu0
        %v573 = vadd.f32 0.0, %v572
        %574 = vmatmul.bf16.gmra.mxu0 %v536
        %v575 = vpop.f32.mrf.mxu0
        %v576 = vadd.f32 0.0, %v575
        %v577 = vpop.f32.mrf.mxu0
        %v578 = vadd.f32 0.0, %v577
        %579 = vdwg.mxu0
        %v580 = vadd.f32 %v477, %v551
        %v581 = vadd.f32 %v479, %v553
        %v582 = vadd.f32 %v482, %v556
        %v583 = vadd.f32 %v484, %v558
        %v584 = vadd.f32 %v487, %v561
        %v585 = vadd.f32 %v489, %v563
        %v586 = vadd.f32 %v492, %v566
        %v587 = vadd.f32 %v494, %v568
        %v588 = vadd.f32 %v497, %v571
        %v589 = vadd.f32 %v499, %v573
        %v590 = vadd.f32 %v502, %v576
        %v591 = vadd.f32 %v504, %v578
        %v592 = vlaneseq
        %v593 = vshrl.u32 %v592, 7
        %v594 = vadd.s32 %v593, 8
        %v595 = vadd.s32 %v593, 16
        %v596 = vadd.s32 %v593, 24
        %v597 = vadd.s32 %v593, 32
        %v598 = vadd.s32 %v593, 40
        %v599 = vlaneseq
        %v600 = vand.u32 %v599, 127
        %v601 = vmul.u32 %v593, 2
        %v602 = vmul.u32 %v594, 2
        %v603 = vmul.u32 %v595, 2
        %v604 = vmul.u32 %v596, 2
        %v605 = vmul.u32 %v597, 2
        %v606 = vmul.u32 %v598, 2
        %vm607 = vcmp.eq.s32.totalorder %v600, %v601
        %vm608 = vcmp.eq.s32.totalorder %v600, %v602
        %vm609 = vcmp.eq.s32.totalorder %v600, %v603
        %vm610 = vcmp.eq.s32.totalorder %v600, %v604
        %vm611 = vcmp.eq.s32.totalorder %v600, %v605
        %vm612 = vcmp.eq.s32.totalorder %v600, %v606
        %v613 = vsel %vm607, 1, 0
        %v614 = vsel %vm608, 1, 0
        %v615 = vsel %vm609, 1, 0
        %v616 = vsel %vm610, 1, 0
        %v617 = vsel %vm611, 1, 0
        %v618 = vsel %vm612, 1, 0
        %v619 = vcvt.s32.f32 %v613
        %v620 = vcvt.s32.f32 %v614
        %v621 = vcvt.s32.f32 %v615
        %v622 = vcvt.s32.f32 %v616
        %v623 = vcvt.s32.f32 %v617
        %v624 = vcvt.s32.f32 %v618
        %v625 = vld [vmem:[%s2] sm:$0x1]
        %v627 = vperm.slane %v625, 0
        %vm629 = vcmask 760832
        %v631 = vsel %vm629, %v619, 0
        %v634 = vsel %vm629, %v620, 0
        %v637 = vsel %vm629, %v621, 0
        %v640 = vsel %vm629, %v622, 0
        %v643 = vsel %vm629, %v623, 0
        %v646 = vsel %vm629, %v624, 0
        %vm648 = vcmask 1044480
        %v650 = vsel %vm648, %v591, 0
        %652 = vmatpush.msra.mxu0 0.0
        %653 = vmatpush.msra.mxu0 0.0
        %654 = vmatpush.msra.mxu0 0.0
        %655 = vmatpush.msra.mxu0 0.0
        %656 = vmatpush.msra.mxu0 %v650
        %657 = vmatpush.msra.mxu0 %v590
        %658 = vmatpush.msra.mxu0 %v589
        %659 = vmatpush.msra.mxu0 %v588
        %660 = vmatpush.msra.mxu0 %v587
        %661 = vmatpush.msra.mxu0 %v586
        %662 = vmatpush.msra.mxu0 %v585
        %663 = vmatpush.msra.mxu0 %v584
        %664 = vmatpush.msra.mxu0 %v583
        %665 = vmatpush.msra.mxu0 %v582
        %666 = vmatpush.msra.mxu0 %v581
        %667 = vmatpush.msra.mxu0 %v580
        %668 = vmatmul.f32.gmra.mxu0 %v631
        %v669 = vpop.f32.mrf.mxu0
        %v670 = vadd.f32 %v627, %v669
        %671 = vmatmul.f32.gmra.mxu0 %v634
        %v672 = vpop.f32.mrf.mxu0
        %v673 = vadd.f32 %v627, %v672
        %674 = vmatmul.f32.gmra.mxu0 %v637
        %v675 = vpop.f32.mrf.mxu0
        %v676 = vadd.f32 %v627, %v675
        %677 = vmatmul.f32.gmra.mxu0 %v640
        %v678 = vpop.f32.mrf.mxu0
        %v679 = vadd.f32 %v627, %v678
        %680 = vmatmul.f32.gmra.mxu0 %v643
        %v681 = vpop.f32.mrf.mxu0
        %v682 = vadd.f32 %v627, %v681
        %683 = vmatmul.f32.gmra.mxu0 %v646
        %v684 = vpop.f32.mrf.mxu0
        %v685 = vadd.f32 %v627, %v684
        %686 = vdwg.mxu0
        %v687 = vmax.f32 %v670, 0.0
        %v688 = vmax.f32 %v673, 0.0
        %v689 = vmax.f32 %v676, 0.0
        %v690 = vmax.f32 %v679, 0.0
        %v691 = vmax.f32 %v682, 0.0
        %v692 = vmax.f32 %v685, 0.0
        %v693 = vpack.c.bf16 %v687, %v687
        %v694 = vpack.c.bf16 %v688, %v688
        %v695 = vpack.c.bf16 %v689, %v689
        %v696 = vpack.c.bf16 %v690, %v690
        %v697 = vpack.c.bf16 %v691, %v691
        %v698 = vpack.c.bf16 %v692, %v692
        %v699 = vld [vmem:[%s3] sm:$0xf]
        %v700 = vld [vmem:[%s3 + $0x4] sm:$0xf]
        %v701 = vld [vmem:[%s3 + $0x8] sm:$0xf]
        %v702 = vld [vmem:[%s3 + $0xc] sm:$0xf]
        %s703 = scalar_lea.vmem %s3, 16
        %v704 = vld [vmem:[%s703] sm:$0xf]
        %v705 = vld [vmem:[%s703 + $0x4] sm:$0xf]
        %v706 = vld [vmem:[%s703 + $0x8] sm:$0xf]
        %v707 = vld [vmem:[%s703 + $0xc] sm:$0xf]
        %v714 = vunpack.c.l.b16 %v693
        %v715 = vunpack.c.l.b16 %v694
        %v716 = vunpack.c.l.b16 %v695
        %v717 = vunpack.c.l.b16 %v696
        %v718 = vunpack.c.l.b16 %v697
        %v719 = vunpack.c.l.b16 %v698
        %v720 = vpack.c.b16 %v715, %v714
        %v721 = vpack.c.b16 %v717, %v716
        %v722 = vpack.c.b16 %v719, %v718
        %v724 = vshrl.u32 %v720, 16
        %v726 = vshll.u32 %v720, 16
        %v728 = vrot.slane %v726, 1
        %v729 = vor.u32 %v724, %v728
        %v731 = vshll.u32 %v721, 16
        %v733 = vrot.slane %v731, 1
        %v734 = vsel %vm342, %v729, %v733
        %v735 = vshrl.u32 %v721, 16
        %v737 = vor.u32 %v735, %v733
        %v739 = vshll.u32 %v722, 16
        %v741 = vrot.slane %v739, 1
        %v742 = vsel %vm342, %v737, %v741
        %v743 = vshrl.u32 %v722, 16
        %v745 = vor.u32 %v743, %v741
        %v750 = vunpack.c.l.b16 %v704
        %v751 = vunpack.c.l.b16 %v705
        %v752 = vunpack.c.l.b16 %v706
        %v753 = vunpack.c.l.b16 %v707
        %v754 = vpack.c.b16 %v751, %v750
        %v755 = vpack.c.b16 %v753, %v752
        %vm758 = vcmask 261120
        %v760 = vsel %vm758, %v734, 0
        %v763 = vsel %vm758, %v742, 0
        %v766 = vsel %vm758, %v745, 0
        %768 = vmatpush.bf16.msra.mxu0 0
        %769 = vmatpush.bf16.msra.mxu0 0
        %770 = vmatpush.bf16.msra.mxu0 0
        %771 = vmatpush.bf16.msra.mxu0 0
        %772 = vmatpush.bf16.msra.mxu0 0
        %773 = vmatpush.bf16.msra.mxu0 0
        %774 = vmatpush.bf16.msra.mxu0 %v755
        %775 = vmatpush.bf16.msra.mxu0 %v754
        %776 = vmatmul.bf16.gmra.mxu0 %v760
        %v777 = vpop.f32.mrf.mxu0
        %v778 = vadd.f32 0.0, %v777
        %v779 = vpop.f32.mrf.mxu0
        %v780 = vadd.f32 0.0, %v779
        %781 = vmatmul.bf16.gmra.mxu0 %v763
        %v782 = vpop.f32.mrf.mxu0
        %v783 = vadd.f32 0.0, %v782
        %v784 = vpop.f32.mrf.mxu0
        %v785 = vadd.f32 0.0, %v784
        %786 = vmatmul.bf16.gmra.mxu0 %v766
        %v787 = vpop.f32.mrf.mxu0
        %v788 = vadd.f32 0.0, %v787
        %v789 = vpop.f32.mrf.mxu0
        %v790 = vadd.f32 0.0, %v789
        %791 = vdwg.mxu0
        %v796 = vunpack.c.l.b16 %v699
        %v797 = vunpack.c.l.b16 %v700
        %v798 = vunpack.c.l.b16 %v701
        %v799 = vunpack.c.l.b16 %v702
        %v800 = vpack.c.b16 %v797, %v796
        %v801 = vpack.c.b16 %v799, %v798
        %v804 = vsel %vm758, %v720, 0
        %v806 = vsel %vm758, %v721, 0
        %v808 = vsel %vm758, %v722, 0
        %810 = vmatpush.bf16.msra.mxu0 0
        %811 = vmatpush.bf16.msra.mxu0 0
        %812 = vmatpush.bf16.msra.mxu0 0
        %813 = vmatpush.bf16.msra.mxu0 0
        %814 = vmatpush.bf16.msra.mxu0 0
        %815 = vmatpush.bf16.msra.mxu0 0
        %816 = vmatpush.bf16.msra.mxu0 %v801
        %817 = vmatpush.bf16.msra.mxu0 %v800
        %818 = vmatmul.bf16.gmra.mxu0 %v804
        %v819 = vpop.f32.mrf.mxu0
        %v820 = vadd.f32 %v778, %v819
        %v821 = vpop.f32.mrf.mxu0
        %v822 = vadd.f32 %v780, %v821
        %823 = vmatmul.bf16.gmra.mxu0 %v806
        %v824 = vpop.f32.mrf.mxu0
        %v825 = vadd.f32 %v783, %v824
        %v826 = vpop.f32.mrf.mxu0
        %v827 = vadd.f32 %v785, %v826
        %828 = vmatmul.bf16.gmra.mxu0 %v808
        %v829 = vpop.f32.mrf.mxu0
        %v830 = vadd.f32 %v788, %v829
        %v831 = vpop.f32.mrf.mxu0
        %v832 = vadd.f32 %v790, %v831
        %833 = vdwg.mxu0
        %s834 = scalar_lea.vmem %s3, 32
        %v835 = vld [vmem:[%s834] sm:$0xf]
        %v836 = vld [vmem:[%s834 + $0x4] sm:$0xf]
        %v837 = vld [vmem:[%s834 + $0x8] sm:$0xf]
        %v838 = vld [vmem:[%s834 + $0xc] sm:$0xf]
        %v839 = vrot.slane %v720, 1
        %v840 = vrot.slane %v721, 1
        %v841 = vsel %vm508, %v839, %v840
        %v842 = vrot.slane %v722, 1
        %v843 = vsel %vm508, %v840, %v842
        %v848 = vunpack.c.l.b16 %v835
        %v849 = vunpack.c.l.b16 %v836
        %v850 = vunpack.c.l.b16 %v837
        %v851 = vunpack.c.l.b16 %v838
        %v852 = vpack.c.b16 %v849, %v848
        %v853 = vpack.c.b16 %v851, %v850
        %v857 = vsel %vm758, %v841, 0
        %v860 = vsel %vm758, %v843, 0
        %v863 = vsel %vm758, %v842, 0
        %865 = vmatpush.bf16.msra.mxu0 0
        %866 = vmatpush.bf16.msra.mxu0 0
        %867 = vmatpush.bf16.msra.mxu0 0
        %868 = vmatpush.bf16.msra.mxu0 0
        %869 = vmatpush.bf16.msra.mxu0 0
        %870 = vmatpush.bf16.msra.mxu0 0
        %871 = vmatpush.bf16.msra.mxu0 %v853
        %872 = vmatpush.bf16.msra.mxu0 %v852
        %873 = vmatmul.bf16.gmra.mxu0 %v857
        %v874 = vpop.f32.mrf.mxu0
        %v875 = vadd.f32 0.0, %v874
        %v876 = vpop.f32.mrf.mxu0
        %v877 = vadd.f32 0.0, %v876
        %878 = vmatmul.bf16.gmra.mxu0 %v860
        %v879 = vpop.f32.mrf.mxu0
        %v880 = vadd.f32 0.0, %v879
        %v881 = vpop.f32.mrf.mxu0
        %v882 = vadd.f32 0.0, %v881
        %883 = vmatmul.bf16.gmra.mxu0 %v863
        %v884 = vpop.f32.mrf.mxu0
        %v885 = vadd.f32 0.0, %v884
        %v886 = vpop.f32.mrf.mxu0
        %v887 = vadd.f32 0.0, %v886
        %888 = vdwg.mxu0
        %v889 = vadd.f32 %v820, %v875
        %v890 = vadd.f32 %v822, %v877
        %v891 = vadd.f32 %v825, %v880
        %v892 = vadd.f32 %v827, %v882
        %v893 = vadd.f32 %v830, %v885
        %v894 = vadd.f32 %v832, %v887
        %v895 = vld [vmem:[%s4] sm:$0x1]
        %v897 = vperm.slane %v895, 0
        %v899 = vadd.f32 %v889, %v897
        %v900 = vadd.f32 %v890, %v897
        %v901 = vadd.f32 %v891, %v897
        %v902 = vadd.f32 %v892, %v897
        %v903 = vadd.f32 %v893, %v897
        %v904 = vadd.f32 %v894, %v897
        %v905 = vmax.f32 %v899, 0.0
        %v906 = vmax.f32 %v900, 0.0
        %v907 = vmax.f32 %v901, 0.0
        %v908 = vmax.f32 %v902, 0.0
        %v909 = vmax.f32 %v903, 0.0
        %v910 = vmax.f32 %v904, 0.0
        %v911 = vadd.s32 %v600, 1
        %vm912 = vcmp.eq.s32.totalorder %v593, %v911
        %vm913 = vcmp.eq.s32.totalorder %v594, %v911
        %vm914 = vcmp.eq.s32.totalorder %v595, %v911
        %vm915 = vcmp.eq.s32.totalorder %v596, %v911
        %vm916 = vcmp.eq.s32.totalorder %v597, %v911
        %vm917 = vcmp.eq.s32.totalorder %v598, %v911
        %v918 = vsel %vm912, 1, 0
        %v919 = vsel %vm913, 1, 0
        %v920 = vsel %vm914, 1, 0
        %v921 = vsel %vm915, 1, 0
        %v922 = vsel %vm916, 1, 0
        %v923 = vsel %vm917, 1, 0
        %v924 = vcvt.s32.f32 %v918
        %v925 = vcvt.s32.f32 %v919
        %v926 = vcvt.s32.f32 %v920
        %v927 = vcvt.s32.f32 %v921
        %v928 = vcvt.s32.f32 %v922
        %v929 = vcvt.s32.f32 %v923
        %vm930 = vcmask 367616
        %v932 = vsel %vm930, %v924, 0
        %v935 = vsel %vm930, %v925, 0
        %v938 = vsel %vm930, %v926, 0
        %v941 = vsel %vm930, %v927, 0
        %v944 = vsel %vm930, %v928, 0
        %v947 = vsel %vm930, %v929, 0
        %v950 = vsel %vm648, %v910, 0
        %952 = vmatpush.msra.mxu0 0.0
        %953 = vmatpush.msra.mxu0 0.0
        %954 = vmatpush.msra.mxu0 0.0
        %955 = vmatpush.msra.mxu0 0.0
        %956 = vmatpush.msra.mxu0 0.0
        %957 = vmatpush.msra.mxu0 0.0
        %958 = vmatpush.msra.mxu0 0.0
        %959 = vmatpush.msra.mxu0 0.0
        %960 = vmatpush.msra.mxu0 0.0
        %961 = vmatpush.msra.mxu0 0.0
        %962 = vmatpush.msra.mxu0 %v950
        %963 = vmatpush.msra.mxu0 %v909
        %964 = vmatpush.msra.mxu0 %v908
        %965 = vmatpush.msra.mxu0 %v907
        %966 = vmatpush.msra.mxu0 %v906
        %967 = vmatpush.msra.mxu0 %v905
        %968 = vmatmul.f32.gmra.mxu0 %v932
        %v969 = vpop.f32.mrf.mxu0
        %v970 = vadd.f32 0.0, %v969
        %971 = vmatmul.f32.gmra.mxu0 %v935
        %v972 = vpop.f32.mrf.mxu0
        %v973 = vadd.f32 0.0, %v972
        %974 = vmatmul.f32.gmra.mxu0 %v938
        %v975 = vpop.f32.mrf.mxu0
        %v976 = vadd.f32 0.0, %v975
        %977 = vmatmul.f32.gmra.mxu0 %v941
        %v978 = vpop.f32.mrf.mxu0
        %v979 = vadd.f32 0.0, %v978
        %980 = vmatmul.f32.gmra.mxu0 %v944
        %v981 = vpop.f32.mrf.mxu0
        %v982 = vadd.f32 0.0, %v981
        %983 = vmatmul.f32.gmra.mxu0 %v947
        %v984 = vpop.f32.mrf.mxu0
        %v985 = vadd.f32 0.0, %v984
        %986 = vdwg.mxu0
        %v987 = vpack.c.bf16 %v970, %v970
        %v988 = vpack.c.bf16 %v973, %v973
        %v989 = vpack.c.bf16 %v976, %v976
        %v990 = vpack.c.bf16 %v979, %v979
        %v991 = vpack.c.bf16 %v982, %v982
        %v992 = vpack.c.bf16 %v985, %v985
        %v993 = vld [vmem:[%s5] sm:$0xf]
        %v994 = vld [vmem:[%s5 + $0x4] sm:$0xf]
        %v995 = vld [vmem:[%s5 + $0x8] sm:$0xf]
        %v996 = vld [vmem:[%s5 + $0xc] sm:$0xf]
        %s997 = scalar_lea.vmem %s5, 16
        %v998 = vld [vmem:[%s997] sm:$0xf]
        %v999 = vld [vmem:[%s997 + $0x4] sm:$0xf]
        %v1000 = vld [vmem:[%s997 + $0x8] sm:$0xf]
        %v1001 = vld [vmem:[%s997 + $0xc] sm:$0xf]
        %v1008 = vunpack.c.l.b16 %v987
        %v1009 = vunpack.c.l.b16 %v988
        %v1010 = vunpack.c.l.b16 %v989
        %v1011 = vunpack.c.l.b16 %v990
        %v1012 = vunpack.c.l.b16 %v991
        %v1013 = vunpack.c.l.b16 %v992
        %v1014 = vpack.c.b16 %v1009, %v1008
        %v1015 = vpack.c.b16 %v1011, %v1010
        %v1016 = vpack.c.b16 %v1013, %v1012
        %v1018 = vshrl.u32 %v1014, 16
        %v1020 = vshll.u32 %v1014, 16
        %v1022 = vrot.slane %v1020, 1
        %v1023 = vor.u32 %v1018, %v1022
        %v1025 = vshll.u32 %v1015, 16
        %v1027 = vrot.slane %v1025, 1
        %v1028 = vsel %vm342, %v1023, %v1027
        %v1029 = vshrl.u32 %v1015, 16
        %v1031 = vor.u32 %v1029, %v1027
        %v1033 = vshll.u32 %v1016, 16
        %v1035 = vrot.slane %v1033, 1
        %v1036 = vsel %vm342, %v1031, %v1035
        %v1037 = vshrl.u32 %v1016, 16
        %v1039 = vor.u32 %v1037, %v1035
        %v1044 = vunpack.c.l.b16 %v998
        %v1045 = vunpack.c.l.b16 %v999
        %v1046 = vunpack.c.l.b16 %v1000
        %v1047 = vunpack.c.l.b16 %v1001
        %v1048 = vpack.c.b16 %v1045, %v1044
        %v1049 = vpack.c.b16 %v1047, %v1046
        %v1053 = vsel %vm758, %v1028, 0
        %v1056 = vsel %vm758, %v1036, 0
        %v1059 = vsel %vm758, %v1039, 0
        %1061 = vmatpush.bf16.msra.mxu0 0
        %1062 = vmatpush.bf16.msra.mxu0 0
        %1063 = vmatpush.bf16.msra.mxu0 0
        %1064 = vmatpush.bf16.msra.mxu0 0
        %1065 = vmatpush.bf16.msra.mxu0 0
        %1066 = vmatpush.bf16.msra.mxu0 0
        %1067 = vmatpush.bf16.msra.mxu0 %v1049
        %1068 = vmatpush.bf16.msra.mxu0 %v1048
        %1069 = vmatmul.bf16.gmra.mxu0 %v1053
        %v1070 = vpop.f32.mrf.mxu0
        %v1071 = vadd.f32 0.0, %v1070
        %v1072 = vpop.f32.mrf.mxu0
        %v1073 = vadd.f32 0.0, %v1072
        %1074 = vmatmul.bf16.gmra.mxu0 %v1056
        %v1075 = vpop.f32.mrf.mxu0
        %v1076 = vadd.f32 0.0, %v1075
        %v1077 = vpop.f32.mrf.mxu0
        %v1078 = vadd.f32 0.0, %v1077
        %1079 = vmatmul.bf16.gmra.mxu0 %v1059
        %v1080 = vpop.f32.mrf.mxu0
        %v1081 = vadd.f32 0.0, %v1080
        %v1082 = vpop.f32.mrf.mxu0
        %v1083 = vadd.f32 0.0, %v1082
        %1084 = vdwg.mxu0
        %v1089 = vunpack.c.l.b16 %v993
        %v1090 = vunpack.c.l.b16 %v994
        %v1091 = vunpack.c.l.b16 %v995
        %v1092 = vunpack.c.l.b16 %v996
        %v1093 = vpack.c.b16 %v1090, %v1089
        %v1094 = vpack.c.b16 %v1092, %v1091
        %v1097 = vsel %vm758, %v1014, 0
        %v1099 = vsel %vm758, %v1015, 0
        %v1101 = vsel %vm758, %v1016, 0
        %1103 = vmatpush.bf16.msra.mxu0 0
        %1104 = vmatpush.bf16.msra.mxu0 0
        %1105 = vmatpush.bf16.msra.mxu0 0
        %1106 = vmatpush.bf16.msra.mxu0 0
        %1107 = vmatpush.bf16.msra.mxu0 0
        %1108 = vmatpush.bf16.msra.mxu0 0
        %1109 = vmatpush.bf16.msra.mxu0 %v1094
        %1110 = vmatpush.bf16.msra.mxu0 %v1093
        %1111 = vmatmul.bf16.gmra.mxu0 %v1097
        %v1112 = vpop.f32.mrf.mxu0
        %v1113 = vadd.f32 %v1071, %v1112
        %v1114 = vpop.f32.mrf.mxu0
        %v1115 = vadd.f32 %v1073, %v1114
        %1116 = vmatmul.bf16.gmra.mxu0 %v1099
        %v1117 = vpop.f32.mrf.mxu0
        %v1118 = vadd.f32 %v1076, %v1117
        %v1119 = vpop.f32.mrf.mxu0
        %v1120 = vadd.f32 %v1078, %v1119
        %1121 = vmatmul.bf16.gmra.mxu0 %v1101
        %v1122 = vpop.f32.mrf.mxu0
        %v1123 = vadd.f32 %v1081, %v1122
        %v1124 = vpop.f32.mrf.mxu0
        %v1125 = vadd.f32 %v1083, %v1124
        %1126 = vdwg.mxu0
        %s1127 = scalar_lea.vmem %s5, 32
        %v1128 = vld [vmem:[%s1127] sm:$0xf]
        %v1129 = vld [vmem:[%s1127 + $0x4] sm:$0xf]
        %v1130 = vld [vmem:[%s1127 + $0x8] sm:$0xf]
        %v1131 = vld [vmem:[%s1127 + $0xc] sm:$0xf]
        %v1132 = vrot.slane %v1014, 1
        %v1133 = vrot.slane %v1015, 1
        %v1134 = vsel %vm508, %v1132, %v1133
        %v1135 = vrot.slane %v1016, 1
        %v1136 = vsel %vm508, %v1133, %v1135
        %v1141 = vunpack.c.l.b16 %v1128
        %v1142 = vunpack.c.l.b16 %v1129
        %v1143 = vunpack.c.l.b16 %v1130
        %v1144 = vunpack.c.l.b16 %v1131
        %v1145 = vpack.c.b16 %v1142, %v1141
        %v1146 = vpack.c.b16 %v1144, %v1143
        %v1150 = vsel %vm758, %v1134, 0
        %v1153 = vsel %vm758, %v1136, 0
        %v1156 = vsel %vm758, %v1135, 0
        %1158 = vmatpush.bf16.msra.mxu0 0
        %1159 = vmatpush.bf16.msra.mxu0 0
        %1160 = vmatpush.bf16.msra.mxu0 0
        %1161 = vmatpush.bf16.msra.mxu0 0
        %1162 = vmatpush.bf16.msra.mxu0 0
        %1163 = vmatpush.bf16.msra.mxu0 0
        %1164 = vmatpush.bf16.msra.mxu0 %v1146
        %1165 = vmatpush.bf16.msra.mxu0 %v1145
        %1166 = vmatmul.bf16.gmra.mxu0 %v1150
        %v1167 = vpop.f32.mrf.mxu0
        %v1168 = vadd.f32 0.0, %v1167
        %v1169 = vpop.f32.mrf.mxu0
        %v1170 = vadd.f32 0.0, %v1169
        %1171 = vmatmul.bf16.gmra.mxu0 %v1153
        %v1172 = vpop.f32.mrf.mxu0
        %v1173 = vadd.f32 0.0, %v1172
        %v1174 = vpop.f32.mrf.mxu0
        %v1175 = vadd.f32 0.0, %v1174
        %1176 = vmatmul.bf16.gmra.mxu0 %v1156
        %v1177 = vpop.f32.mrf.mxu0
        %v1178 = vadd.f32 0.0, %v1177
        %v1179 = vpop.f32.mrf.mxu0
        %v1180 = vadd.f32 0.0, %v1179
        %1181 = vdwg.mxu0
        %v1182 = vadd.f32 %v1113, %v1168
        %v1183 = vadd.f32 %v1115, %v1170
        %v1184 = vadd.f32 %v1118, %v1173
        %v1185 = vadd.f32 %v1120, %v1175
        %v1186 = vadd.f32 %v1123, %v1178
        %v1187 = vadd.f32 %v1125, %v1180
        %v1188 = vld [vmem:[%s6] sm:$0x1]
        %v1190 = vperm.slane %v1188, 0
        %v1192 = vadd.f32 %v1182, %v1190
        %v1193 = vadd.f32 %v1183, %v1190
        %v1194 = vadd.f32 %v1184, %v1190
        %v1195 = vadd.f32 %v1185, %v1190
        %v1196 = vadd.f32 %v1186, %v1190
        %v1197 = vadd.f32 %v1187, %v1190
        %v1198 = vmax.f32 %v1192, 0.0
        %v1199 = vmax.f32 %v1193, 0.0
        %v1200 = vmax.f32 %v1194, 0.0
        %v1201 = vmax.f32 %v1195, 0.0
        %v1202 = vmax.f32 %v1196, 0.0
        %v1203 = vmax.f32 %v1197, 0.0
        %v1204 = vpack.c.bf16 %v1198, %v1198
        %v1205 = vpack.c.bf16 %v1199, %v1199
        %v1206 = vpack.c.bf16 %v1200, %v1200
        %v1207 = vpack.c.bf16 %v1201, %v1201
        %v1208 = vpack.c.bf16 %v1202, %v1202
        %v1209 = vpack.c.bf16 %v1203, %v1203
        %vm1210 = vcmask 519168
        %1211 = vst.msk [vmem:[%s295] sm:$0xf] %vm1210, %v1204
        %1212 = vst.msk [vmem:[%s295 + $0x4] sm:$0xf] %vm1210, %v1205
        %1213 = vst.msk [vmem:[%s295 + $0x8] sm:$0xf] %vm1210, %v1206
        %1214 = vst.msk [vmem:[%s295 + $0xc] sm:$0xf] %vm1210, %v1207
        %1215 = vst.msk [vmem:[%s295 + $0x10] sm:$0xf] %vm1210, %v1208
        %vm1216 = vcmask 518144
        %vm1217 = vsmask.f32 2304
        %vm1218 = vmand %vm1216, %vm1217
        %v1219 = vld [vmem:[%s295 + $0x14] sm:$0x7]
        %v1220 = vsel %vm1218, %v1209, %v1219
        %1221 = vst [vmem:[%s295 + $0x14] sm:$0x7] %v1220
        %p1222 = scmp.lt.s32.totalorder %s19, 1
        %s1223 = scalar_select %p1222, %s19, 1
        %s1224 = smul.addr %s1223, 6
        %s1225 = smul.addr %s1224, 4
        %s1226 = scalar_lea.vmem %s7, %s1225
        // Predicated region
        $region53: #{_run_block.1} parent=47 // pred_check
          %p1227 = pneg %p189
        $region54: #{_run_block.1} parent=47 // pred_check_branch
          %1229 = sbr.rel (%p1227) target = $region56
        $region55: #{_run_block.1} parent=47 // pred_region
          _
        $region56: #{_run_block.1} parent=47 // pred_fallthru
          _
      $region48: #{_run_block.1} parent=5 // pred_fallthru
        _
      %p1230 = scmp.le.s32.totalorder 2, %s14
      // Predicated region
      $region57: #{_run_block.1} parent=5 // pred_check
        %p1231 = pneg %p1230
      $region58: #{_run_block.1} parent=5 // pred_check_branch
        %1233 = sbr.rel (%p1231) target = $region60
      $region59: #{_run_block.1} parent=5 // pred_region
        %s1234 = ssub.s32 %s14, 2
        // Predicated region
        $region61: #{_run_block.1} parent=59 // pred_check
          %p1235 = pneg %p195
        $region62: #{_run_block.1} parent=59 // pred_check_branch
          %1237 = sbr.rel (%p1235) target = $region64
        $region63: #{_run_block.1} parent=59 // pred_region
          %p1238 = scmp.lt.s32.totalorder %s20, 1
          %s1239 = scalar_select %p1238, %s20, 1
          %s1240 = smul.addr %s1239, 6
          %s1241 = smul.addr %s1240, 4
          %s1242 = scalar_lea.vmem %s7, %s1241
        $region64: #{_run_block.1} parent=59 // pred_fallthru
          _
      $region60: #{_run_block.1} parent=5 // pred_fallthru
        _
    $region6: #{_run_block.1} parent=1 // loop_footer
      %s18 = sadd.s32 1, %s14
    $region7: #{_run_block.1} parent=1 // loop_footer_branch
      %13 = sbr.rel target = $region3
    $region8: #{_run_block.1} parent=1 // loop_exit
      _
    %1243 = vsyncpa [#allocation3], 1
    %s1244 = scalar_lea.sflag [#allocation3], 1
    %1245 = vsyncpa %s1244, 1

</llo_original>
